<compile_context>
chip_gen: v5e
topology: v5e:2x2
jax: 0.10.0
libtpu: 0.0.40
codegen_flags: <defaults>
</compile_context>

<pallas_src>
import functools

import jax
import jax.numpy as jnp
from jax.experimental import pallas as pl
from jax.experimental.pallas import tpu as pltpu

COUT_PAD = 128        # conv output channels padded to lane-dense 128
NC_PAD = 128          # num_classes padded to lane-dense 128 (sliced off outside)
IMGS_PER_STEP = 8     # images per grid step (output block = (8, 128) full tiles)


# -----------------------------------------------------------------------------
# Fused Pallas kernel: conv3x3(pad=1)+ReLU -> global-avg-pool -> linear head
# -----------------------------------------------------------------------------
def _fused_cnn_kernel(x_ref, wc_ref, bc_ref, wfc_ref, bfc_ref, o_ref):
    """B images per grid step.

    x_ref:   [B, HW, KP]        bf16 im2col patches (tap-major, cin-minor, K zero-padded)
    wc_ref:  [KP, COUT_PAD]     bf16 flattened conv weights (rows match patch K order)
    bc_ref:  [1, COUT_PAD]      f32 conv bias (zero-padded)
    wfc_ref: [COUT_PAD, NC_PAD] f32 classifier weight (zero-padded)
    bfc_ref: [1, NC_PAD]        f32 classifier bias (zero-padded)
    o_ref:   [B, NC_PAD]        f32 logits (padded classes)
    """
    b_blk, hw, _ = x_ref.shape
    inv_hw = 1.0 / hw

    wc = wc_ref[...]            # resident bf16 weights
    bc = bc_ref[...]            # f32 bias row

    # Stream per image: one K=32 matmul, then bias+ReLU fused straight into the
    # spatial mean so only a [1, COUT_PAD] row stays live per image.
    rows = []
    for b in range(b_blk):
        acc = jnp.dot(x_ref[b], wc, preferred_element_type=jnp.float32)  # [HW, COUT_PAD]
        feat = jnp.maximum(acc + bc, 0.0)
        rows.append(jnp.sum(feat, axis=0, keepdims=True) * inv_hw)       # [1, COUT_PAD]
    pooled = jnp.concatenate(rows, axis=0)                               # [B, COUT_PAD]

    logits = jnp.dot(pooled, wfc_ref[...],
                     preferred_element_type=jnp.float32) + bfc_ref[...]  # [B, NC_PAD]
    o_ref[...] = logits


def _fused_pallas_forward(patches, wc, bc, wfc, bfc, num_classes, imgs_per_step):
    n_pad, hw, kp = patches.shape
    b = imgs_per_step
    grid = (n_pad // b,)

    flops = 2 * n_pad * hw * kp * COUT_PAD + 2 * n_pad * COUT_PAD * NC_PAD
    bytes_accessed = (patches.size * 2 + wc.size * 2
                      + (bc.size + wfc.size + bfc.size) * 4 + n_pad * NC_PAD * 4)

    out = pl.pallas_call(
        _fused_cnn_kernel,
        out_shape=jax.ShapeDtypeStruct((n_pad, NC_PAD), jnp.float32),
        grid=grid,
        in_specs=[
            # B images of patches per step
            pl.BlockSpec((b, hw, kp), lambda i: (i, 0, 0)),
            # weights / biases: constant block index -> stay resident in VMEM
            pl.BlockSpec((kp, COUT_PAD), lambda i: (0, 0)),
            pl.BlockSpec((1, COUT_PAD), lambda i: (0, 0)),
            pl.BlockSpec((COUT_PAD, NC_PAD), lambda i: (0, 0)),
            pl.BlockSpec((1, NC_PAD), lambda i: (0, 0)),
        ],
        out_specs=pl.BlockSpec((b, NC_PAD), lambda i: (i, 0)),
        compiler_params=pltpu.CompilerParams(
            dimension_semantics=("parallel",),      # megacore sharding on v7x
            vmem_limit_bytes=32 * 1024 * 1024,      # plenty: working set is ~ a few MiB
        ),
        cost_estimate=pl.CostEstimate(
            flops=flops, transcendentals=0, bytes_accessed=bytes_accessed),
    )(patches, wc, bc, wfc, bfc)

    return out[:, :num_classes]


# -----------------------------------------------------------------------------
# Parameters (PyTorch layouts) + kernel-layout preparation
# -----------------------------------------------------------------------------
def make_params(key, cin=3, cout=32, num_classes=10):
    k1, k2, k3, k4 = jax.random.split(key, 4)
    return {
        "w_conv": 0.1 * jax.random.normal(k1, (cout, cin, 3, 3), jnp.float32),
        "b_conv": 0.1 * jax.random.normal(k2, (cout,), jnp.float32),
        "w_fc": 0.1 * jax.random.normal(k3, (num_classes, cout), jnp.float32),
        "b_fc": 0.1 * jax.random.normal(k4, (num_classes,), jnp.float32),
    }


def _prepare_kernel_params(params):
    cout, cin, kh, kw = params["w_conv"].shape
    num_classes = params["w_fc"].shape[0]
    kp = kh * kw * cin
    kp_pad = max(8, -(-kp // 8) * 8)                       # 27 -> 32 for cin=3

    # [Cout,Cin,3,3] -> [3,3,Cin,Cout] -> [9*Cin,Cout]; row order (dh,dw,cin)
    # matches the tap-major / cin-minor patch layout built in _extract_patches.
    wc = jnp.transpose(params["w_conv"], (2, 3, 1, 0)).reshape(kp, cout)
    wc = jnp.pad(wc, ((0, kp_pad - kp), (0, COUT_PAD - cout))).astype(jnp.bfloat16)
    bc = jnp.pad(params["b_conv"], (0, COUT_PAD - cout)).reshape(1, COUT_PAD)
    wfc = jnp.pad(params["w_fc"].T,
                  ((0, COUT_PAD - cout), (0, NC_PAD - num_classes)))
    bfc = jnp.pad(params["b_fc"], (0, NC_PAD - num_classes)).reshape(1, NC_PAD)
    return (wc, bc.astype(jnp.float32), wfc.astype(jnp.float32),
            bfc.astype(jnp.float32), num_classes, kp_pad)


def _extract_patches(x_nchw, kp_pad, imgs_per_step):
    """Single fused wrapper op: NCHW -> bf16 [N_pad, H*W, KP] im2col patches."""
    n, cin, h, w = x_nchw.shape
    x = jnp.transpose(x_nchw, (0, 2, 3, 1))                # NHWC
    xp = jnp.pad(x, ((0, 0), (1, 1), (1, 1), (0, 0)))      # conv padding=1
    taps = [xp[:, dh:dh + h, dw:dw + w, :]
            for dh in range(3) for dw in range(3)]         # tap-major, cin-minor
    patches = jnp.concatenate(taps, axis=-1).reshape(n, h * w, 9 * cin)
    n_pad = -(-n // imgs_per_step) * imgs_per_step
    patches = jnp.pad(patches,
                      ((0, n_pad - n), (0, 0), (0, kp_pad - 9 * cin)))
    return patches.astype(jnp.bfloat16)


# -----------------------------------------------------------------------------
# Inner vision model + wrapper `Model.forward` semantics
# -----------------------------------------------------------------------------
@functools.partial(jax.jit, static_argnames=("imgs_per_step",))
def inner_model_forward(params, x_nchw, imgs_per_step=IMGS_PER_STEP):
    """Tiny CNN classifier fused into a single batched Pallas call."""
    wc, bc, wfc, bfc, num_classes, kp_pad = _prepare_kernel_params(params)
    patches = _extract_patches(x_nchw, kp_pad, imgs_per_step)
    logits = _fused_pallas_forward(patches, wc, bc, wfc, bfc,
                                   num_classes, imgs_per_step)
    return logits[: x_nchw.shape[0]]


def model_forward(params, x, batch_size=None):
    """PyTorch wrapper semantics: chunk into batches, run, vstack.

    The wrapper's chunk loop only bounds device memory; here IMGS_PER_STEP
    images are processed per (parallel) grid step, so one jitted pallas_call
    over the whole batch is numerically identical to chunk-and-vstack and
    avoids per-chunk dispatch / pipeline-drain / ragged-chunk recompiles.
    """
    del batch_size  # subsumed by the per-step image blocking
    return inner_model_forward(params, x)


# -----------------------------------------------------------------------------
# Demo + correctness check
# -----------------------------------------------------------------------------
if __name__ == "__main__":
    key = jax.random.PRNGKey(0)
    k_param, k_in = jax.random.split(key)

    # 16 images, 3 channels, 16x16 (NCHW, PyTorch convention) -> grid=(2,).
    x = jax.random.normal(k_in, (16, 3, 16, 16), jnp.float32)
    params = make_params(k_param, cin=3, cout=32, num_classes=10)

    logits = model_forward(params, x, batch_size=4)
    logits = jax.block_until_ready(logits)
    assert logits.shape == (16, 10), logits.shape

    # Pure-JAX reference with the same bf16 rounding of the MXU operands.
    def ref_forward(params, x_nchw):
        n, cin, H, W = x_nchw.shape
        xh = jnp.transpose(x_nchw, (0, 2, 3, 1))
        xp = jnp.pad(xh, ((0, 0), (1, 1), (1, 1), (0, 0)))
        xp = xp.astype(jnp.bfloat16).astype(jnp.float32)
        wt = jnp.transpose(params["w_conv"], (2, 3, 1, 0))
        wt = wt.astype(jnp.bfloat16).astype(jnp.float32)
        cout = wt.shape[-1]
        acc = jnp.zeros((n, H, W, cout), jnp.float32)
        for dh in range(3):
            for dw in range(3):
                acc = acc + jnp.einsum("nhwc,co->nhwo",
                                       xp[:, dh:dh + H, dw:dw + W, :],
                                       wt[dh, dw],
                                       precision="highest")
        feat = jnp.maximum(acc + params["b_conv"], 0.0)
        pooled = feat.mean(axis=(1, 2))                      # [n, Cout]
        return pooled @ params["w_fc"].T + params["b_fc"]

    ref = ref_forward(params, x)
    max_err = float(jnp.max(jnp.abs(logits - ref)))
    assert jnp.allclose(logits, ref, atol=2e-2, rtol=2e-2), max_err

    print("KERNEL_OK")
</pallas_src>

<mosaic_0001>
module attributes {stable_mosaic.version = 11 : i64} {
  func.func @_fused_cnn_kernel(%arg0: i32, %arg1: memref<8x256x32xbf16, #tpu.memory_space<vmem>>, %arg2: memref<32x128xbf16, #tpu.memory_space<vmem>>, %arg3: memref<1x128xf32, #tpu.memory_space<vmem>>, %arg4: memref<128x128xf32, #tpu.memory_space<vmem>>, %arg5: memref<1x128xf32, #tpu.memory_space<vmem>>, %arg6: memref<8x128xf32, #tpu.memory_space<vmem>>) attributes {dimension_semantics = [#tpu.dimension_semantics<parallel>], iteration_bounds = array<i64: 2>, scalar_prefetch = 0 : i64, scratch_operands = 0 : i64, tpu.core_type = #tpu.core_type<tc>, window_params = [{transform_indices = @transform_0, window_bounds = array<i64: 8, 256, 32>}, {pipeline_mode = #tpu.pipeline_mode<synchronous>, transform_indices = @transform_1, window_bounds = array<i64: 32, 128>}, {pipeline_mode = #tpu.pipeline_mode<synchronous>, transform_indices = @transform_2, window_bounds = array<i64: 1, 128>}, {pipeline_mode = #tpu.pipeline_mode<synchronous>, transform_indices = @transform_3, window_bounds = array<i64: 128, 128>}, {pipeline_mode = #tpu.pipeline_mode<synchronous>, transform_indices = @transform_4, window_bounds = array<i64: 1, 128>}, {transform_indices = @transform_5, window_bounds = array<i64: 8, 128>}]} {
    %c0 = arith.constant 0 : index
    %c0_0 = arith.constant 0 : index
    %0 = vector.load %arg2[%c0, %c0_0] : memref<32x128xbf16, #tpu.memory_space<vmem>>, vector<32x128xbf16>
    %c0_1 = arith.constant 0 : index
    %c0_2 = arith.constant 0 : index
    %1 = vector.load %arg3[%c0_1, %c0_2] : memref<1x128xf32, #tpu.memory_space<vmem>>, vector<1x128xf32>
    %c0_3 = arith.constant 0 : index
    %c0_4 = arith.constant 0 : index
    %c0_5 = arith.constant 0 : index
    %2 = vector.load %arg1[%c0_3, %c0_4, %c0_5] : memref<8x256x32xbf16, #tpu.memory_space<vmem>>, vector<1x256x32xbf16>
    %3 = vector.shape_cast %2 : vector<1x256x32xbf16> to vector<256x32xbf16>
    %cst = arith.constant dense<0.000000e+00> : vector<256x128xf32>
    %4 = tpu.matmul %3, %0, %cst {dimension_numbers = #tpu.dot_dimension_numbers<[1], [0], [0], [1], [0, 0, 1, 1], [], []>} : vector<256x32xbf16>, vector<32x128xbf16>, vector<256x128xf32> -> vector<256x128xf32>
    %5 = vector.broadcast %1 : vector<1x128xf32> to vector<256x128xf32>
    %6 = arith.addf %4, %5 : vector<256x128xf32>
    %cst_6 = arith.constant 0.000000e+00 : f32
    %7 = vector.broadcast %cst_6 : f32 to vector<256x128xf32>
    %8 = arith.maximumf %6, %7 : vector<256x128xf32>
    %cst_7 = arith.constant dense<0.000000e+00> : vector<128xf32>
    %9 = vector.multi_reduction <add>, %8, %cst_7 [0] : vector<256x128xf32> to vector<128xf32>
    %10 = vector.shape_cast %9 : vector<128xf32> to vector<1x128xf32>
    %cst_8 = arith.constant 3.906250e-03 : f32
    %11 = vector.broadcast %cst_8 : f32 to vector<1x128xf32>
    %12 = arith.mulf %10, %11 : vector<1x128xf32>
    %c1 = arith.constant 1 : index
    %c0_9 = arith.constant 0 : index
    %c0_10 = arith.constant 0 : index
    %13 = vector.load %arg1[%c1, %c0_9, %c0_10] : memref<8x256x32xbf16, #tpu.memory_space<vmem>>, vector<1x256x32xbf16>
    %14 = vector.shape_cast %13 : vector<1x256x32xbf16> to vector<256x32xbf16>
    %cst_11 = arith.constant dense<0.000000e+00> : vector<256x128xf32>
    %15 = tpu.matmul %14, %0, %cst_11 {dimension_numbers = #tpu.dot_dimension_numbers<[1], [0], [0], [1], [0, 0, 1, 1], [], []>} : vector<256x32xbf16>, vector<32x128xbf16>, vector<256x128xf32> -> vector<256x128xf32>
    %16 = vector.broadcast %1 : vector<1x128xf32> to vector<256x128xf32>
    %17 = arith.addf %15, %16 : vector<256x128xf32>
    %cst_12 = arith.constant 0.000000e+00 : f32
    %18 = vector.broadcast %cst_12 : f32 to vector<256x128xf32>
    %19 = arith.maximumf %17, %18 : vector<256x128xf32>
    %cst_13 = arith.constant dense<0.000000e+00> : vector<128xf32>
    %20 = vector.multi_reduction <add>, %19, %cst_13 [0] : vector<256x128xf32> to vector<128xf32>
    %21 = vector.shape_cast %20 : vector<128xf32> to vector<1x128xf32>
    %cst_14 = arith.constant 3.906250e-03 : f32
    %22 = vector.broadcast %cst_14 : f32 to vector<1x128xf32>
    %23 = arith.mulf %21, %22 : vector<1x128xf32>
    %c2 = arith.constant 2 : index
    %c0_15 = arith.constant 0 : index
    %c0_16 = arith.constant 0 : index
    %24 = vector.load %arg1[%c2, %c0_15, %c0_16] : memref<8x256x32xbf16, #tpu.memory_space<vmem>>, vector<1x256x32xbf16>
    %25 = vector.shape_cast %24 : vector<1x256x32xbf16> to vector<256x32xbf16>
    %cst_17 = arith.constant dense<0.000000e+00> : vector<256x128xf32>
    %26 = tpu.matmul %25, %0, %cst_17 {dimension_numbers = #tpu.dot_dimension_numbers<[1], [0], [0], [1], [0, 0, 1, 1], [], []>} : vector<256x32xbf16>, vector<32x128xbf16>, vector<256x128xf32> -> vector<256x128xf32>
    %27 = vector.broadcast %1 : vector<1x128xf32> to vector<256x128xf32>
    %28 = arith.addf %26, %27 : vector<256x128xf32>
    %cst_18 = arith.constant 0.000000e+00 : f32
    %29 = vector.broadcast %cst_18 : f32 to vector<256x128xf32>
    %30 = arith.maximumf %28, %29 : vector<256x128xf32>
    %cst_19 = arith.constant dense<0.000000e+00> : vector<128xf32>
    %31 = vector.multi_reduction <add>, %30, %cst_19 [0] : vector<256x128xf32> to vector<128xf32>
    %32 = vector.shape_cast %31 : vector<128xf32> to vector<1x128xf32>
    %cst_20 = arith.constant 3.906250e-03 : f32
    %33 = vector.broadcast %cst_20 : f32 to vector<1x128xf32>
    %34 = arith.mulf %32, %33 : vector<1x128xf32>
    %c3 = arith.constant 3 : index
    %c0_21 = arith.constant 0 : index
    %c0_22 = arith.constant 0 : index
    %35 = vector.load %arg1[%c3, %c0_21, %c0_22] : memref<8x256x32xbf16, #tpu.memory_space<vmem>>, vector<1x256x32xbf16>
    %36 = vector.shape_cast %35 : vector<1x256x32xbf16> to vector<256x32xbf16>
    %cst_23 = arith.constant dense<0.000000e+00> : vector<256x128xf32>
    %37 = tpu.matmul %36, %0, %cst_23 {dimension_numbers = #tpu.dot_dimension_numbers<[1], [0], [0], [1], [0, 0, 1, 1], [], []>} : vector<256x32xbf16>, vector<32x128xbf16>, vector<256x128xf32> -> vector<256x128xf32>
    %38 = vector.broadcast %1 : vector<1x128xf32> to vector<256x128xf32>
    %39 = arith.addf %37, %38 : vector<256x128xf32>
    %cst_24 = arith.constant 0.000000e+00 : f32
    %40 = vector.broadcast %cst_24 : f32 to vector<256x128xf32>
    %41 = arith.maximumf %39, %40 : vector<256x128xf32>
    %cst_25 = arith.constant dense<0.000000e+00> : vector<128xf32>
    %42 = vector.multi_reduction <add>, %41, %cst_25 [0] : vector<256x128xf32> to vector<128xf32>
    %43 = vector.shape_cast %42 : vector<128xf32> to vector<1x128xf32>
    %cst_26 = arith.constant 3.906250e-03 : f32
    %44 = vector.broadcast %cst_26 : f32 to vector<1x128xf32>
    %45 = arith.mulf %43, %44 : vector<1x128xf32>
    %c4 = arith.constant 4 : index
    %c0_27 = arith.constant 0 : index
    %c0_28 = arith.constant 0 : index
    %46 = vector.load %arg1[%c4, %c0_27, %c0_28] : memref<8x256x32xbf16, #tpu.memory_space<vmem>>, vector<1x256x32xbf16>
    %47 = vector.shape_cast %46 : vector<1x256x32xbf16> to vector<256x32xbf16>
    %cst_29 = arith.constant dense<0.000000e+00> : vector<256x128xf32>
    %48 = tpu.matmul %47, %0, %cst_29 {dimension_numbers = #tpu.dot_dimension_numbers<[1], [0], [0], [1], [0, 0, 1, 1], [], []>} : vector<256x32xbf16>, vector<32x128xbf16>, vector<256x128xf32> -> vector<256x128xf32>
    %49 = vector.broadcast %1 : vector<1x128xf32> to vector<256x128xf32>
    %50 = arith.addf %48, %49 : vector<256x128xf32>
    %cst_30 = arith.constant 0.000000e+00 : f32
    %51 = vector.broadcast %cst_30 : f32 to vector<256x128xf32>
    %52 = arith.maximumf %50, %51 : vector<256x128xf32>
    %cst_31 = arith.constant dense<0.000000e+00> : vector<128xf32>
    %53 = vector.multi_reduction <add>, %52, %cst_31 [0] : vector<256x128xf32> to vector<128xf32>
    %54 = vector.shape_cast %53 : vector<128xf32> to vector<1x128xf32>
    %cst_32 = arith.constant 3.906250e-03 : f32
    %55 = vector.broadcast %cst_32 : f32 to vector<1x128xf32>
    %56 = arith.mulf %54, %55 : vector<1x128xf32>
    %c5 = arith.constant 5 : index
    %c0_33 = arith.constant 0 : index
    %c0_34 = arith.constant 0 : index
    %57 = vector.load %arg1[%c5, %c0_33, %c0_34] : memref<8x256x32xbf16, #tpu.memory_space<vmem>>, vector<1x256x32xbf16>
    %58 = vector.shape_cast %57 : vector<1x256x32xbf16> to vector<256x32xbf16>
    %cst_35 = arith.constant dense<0.000000e+00> : vector<256x128xf32>
    %59 = tpu.matmul %58, %0, %cst_35 {dimension_numbers = #tpu.dot_dimension_numbers<[1], [0], [0], [1], [0, 0, 1, 1], [], []>} : vector<256x32xbf16>, vector<32x128xbf16>, vector<256x128xf32> -> vector<256x128xf32>
    %60 = vector.broadcast %1 : vector<1x128xf32> to vector<256x128xf32>
    %61 = arith.addf %59, %60 : vector<256x128xf32>
    %cst_36 = arith.constant 0.000000e+00 : f32
    %62 = vector.broadcast %cst_36 : f32 to vector<256x128xf32>
    %63 = arith.maximumf %61, %62 : vector<256x128xf32>
    %cst_37 = arith.constant dense<0.000000e+00> : vector<128xf32>
    %64 = vector.multi_reduction <add>, %63, %cst_37 [0] : vector<256x128xf32> to vector<128xf32>
    %65 = vector.shape_cast %64 : vector<128xf32> to vector<1x128xf32>
    %cst_38 = arith.constant 3.906250e-03 : f32
    %66 = vector.broadcast %cst_38 : f32 to vector<1x128xf32>
    %67 = arith.mulf %65, %66 : vector<1x128xf32>
    %c6 = arith.constant 6 : index
    %c0_39 = arith.constant 0 : index
    %c0_40 = arith.constant 0 : index
    %68 = vector.load %arg1[%c6, %c0_39, %c0_40] : memref<8x256x32xbf16, #tpu.memory_space<vmem>>, vector<1x256x32xbf16>
    %69 = vector.shape_cast %68 : vector<1x256x32xbf16> to vector<256x32xbf16>
    %cst_41 = arith.constant dense<0.000000e+00> : vector<256x128xf32>
    %70 = tpu.matmul %69, %0, %cst_41 {dimension_numbers = #tpu.dot_dimension_numbers<[1], [0], [0], [1], [0, 0, 1, 1], [], []>} : vector<256x32xbf16>, vector<32x128xbf16>, vector<256x128xf32> -> vector<256x128xf32>
    %71 = vector.broadcast %1 : vector<1x128xf32> to vector<256x128xf32>
    %72 = arith.addf %70, %71 : vector<256x128xf32>
    %cst_42 = arith.constant 0.000000e+00 : f32
    %73 = vector.broadcast %cst_42 : f32 to vector<256x128xf32>
    %74 = arith.maximumf %72, %73 : vector<256x128xf32>
    %cst_43 = arith.constant dense<0.000000e+00> : vector<128xf32>
    %75 = vector.multi_reduction <add>, %74, %cst_43 [0] : vector<256x128xf32> to vector<128xf32>
    %76 = vector.shape_cast %75 : vector<128xf32> to vector<1x128xf32>
    %cst_44 = arith.constant 3.906250e-03 : f32
    %77 = vector.broadcast %cst_44 : f32 to vector<1x128xf32>
    %78 = arith.mulf %76, %77 : vector<1x128xf32>
    %c7 = arith.constant 7 : index
    %c0_45 = arith.constant 0 : index
    %c0_46 = arith.constant 0 : index
    %79 = vector.load %arg1[%c7, %c0_45, %c0_46] : memref<8x256x32xbf16, #tpu.memory_space<vmem>>, vector<1x256x32xbf16>
    %80 = vector.shape_cast %79 : vector<1x256x32xbf16> to vector<256x32xbf16>
    %cst_47 = arith.constant dense<0.000000e+00> : vector<256x128xf32>
    %81 = tpu.matmul %80, %0, %cst_47 {dimension_numbers = #tpu.dot_dimension_numbers<[1], [0], [0], [1], [0, 0, 1, 1], [], []>} : vector<256x32xbf16>, vector<32x128xbf16>, vector<256x128xf32> -> vector<256x128xf32>
    %82 = vector.broadcast %1 : vector<1x128xf32> to vector<256x128xf32>
    %83 = arith.addf %81, %82 : vector<256x128xf32>
    %cst_48 = arith.constant 0.000000e+00 : f32
    %84 = vector.broadcast %cst_48 : f32 to vector<256x128xf32>
    %85 = arith.maximumf %83, %84 : vector<256x128xf32>
    %cst_49 = arith.constant dense<0.000000e+00> : vector<128xf32>
    %86 = vector.multi_reduction <add>, %85, %cst_49 [0] : vector<256x128xf32> to vector<128xf32>
    %87 = vector.shape_cast %86 : vector<128xf32> to vector<1x128xf32>
    %cst_50 = arith.constant 3.906250e-03 : f32
    %88 = vector.broadcast %cst_50 : f32 to vector<1x128xf32>
    %89 = arith.mulf %87, %88 : vector<1x128xf32>
    %90 = tpu.concatenate %12, %23, %34, %45, %56, %67, %78, %89 in 0 : vector<1x128xf32>, vector<1x128xf32>, vector<1x128xf32>, vector<1x128xf32>, vector<1x128xf32>, vector<1x128xf32>, vector<1x128xf32>, vector<1x128xf32> -> vector<8x128xf32>
    %c0_51 = arith.constant 0 : index
    %c0_52 = arith.constant 0 : index
    %91 = vector.load %arg4[%c0_51, %c0_52] : memref<128x128xf32, #tpu.memory_space<vmem>>, vector<128x128xf32>
    %cst_53 = arith.constant dense<0.000000e+00> : vector<8x128xf32>
    %92 = tpu.matmul %90, %91, %cst_53 {dimension_numbers = #tpu.dot_dimension_numbers<[1], [0], [0], [1], [0, 0, 1, 1], [], []>} : vector<8x128xf32>, vector<128x128xf32>, vector<8x128xf32> -> vector<8x128xf32>
    %c0_54 = arith.constant 0 : index
    %c0_55 = arith.constant 0 : index
    %93 = vector.load %arg5[%c0_54, %c0_55] : memref<1x128xf32, #tpu.memory_space<vmem>>, vector<1x128xf32>
    %94 = vector.broadcast %93 : vector<1x128xf32> to vector<8x128xf32>
    %95 = arith.addf %92, %94 : vector<8x128xf32>
    %c0_56 = arith.constant 0 : index
    %c0_57 = arith.constant 0 : index
    %96 = vector.load %arg6[%c0_56, %c0_57] : memref<8x128xf32, #tpu.memory_space<vmem>>, vector<8x128xf32>
    tpu.vector_store %arg6[%c0_56, %c0_57], %95 {strides = array<i32>} : memref<8x128xf32, #tpu.memory_space<vmem>>, vector<8x128xf32>,
    return
  }
  func.func @transform_0(%arg0: i32) -> (i32, i32, i32) {
    %c0_i32 = arith.constant 0 : i32
    %c0_i32_0 = arith.constant 0 : i32
    %c0_i32_1 = arith.constant 0 : i32
    return %arg0, %c0_i32, %c0_i32_0 : i32, i32, i32
  }
  func.func @transform_1(%arg0: i32) -> (i32, i32) {
    %c0_i32 = arith.constant 0 : i32
    %c0_i32_0 = arith.constant 0 : i32
    %c0_i32_1 = arith.constant 0 : i32
    return %c0_i32, %c0_i32_0 : i32, i32
  }
  func.func @transform_2(%arg0: i32) -> (i32, i32) {
    %c0_i32 = arith.constant 0 : i32
    %c0_i32_0 = arith.constant 0 : i32
    %c0_i32_1 = arith.constant 0 : i32
    return %c0_i32, %c0_i32_0 : i32, i32
  }
  func.func @transform_3(%arg0: i32) -> (i32, i32) {
    %c0_i32 = arith.constant 0 : i32
    %c0_i32_0 = arith.constant 0 : i32
    %c0_i32_1 = arith.constant 0 : i32
    return %c0_i32, %c0_i32_0 : i32, i32
  }
  func.func @transform_4(%arg0: i32) -> (i32, i32) {
    %c0_i32 = arith.constant 0 : i32
    %c0_i32_0 = arith.constant 0 : i32
    %c0_i32_1 = arith.constant 0 : i32
    return %c0_i32, %c0_i32_0 : i32, i32
  }
  func.func @transform_5(%arg0: i32) -> (i32, i32) {
    %c0_i32 = arith.constant 0 : i32
    %c0_i32_0 = arith.constant 0 : i32
    return %arg0, %c0_i32 : i32, i32
  }
}

</mosaic_0001>

<llo_original>
// kernel: inner_model_forward.1
$region0: #{inner_model_forward.1}
  #allocation0 [shape = 'u32[]', space=smem, size = 0x4, offset = 0x4, fixed_abs, tag = 'smem constant byte address 0x4 - core index']
  #allocation1 [shape = 'u32[72,128]{1,0:T(1,128)}', space=vmem, size = 0x9000, scoped, tag = 'internal scratch']
  %s0 = inlined_call_operand.vmem [shape: bf16[16,256,32], index: 0, kind: input, shape index: {}]
  %s1 = inlined_call_operand.vmem [shape: bf16[32,128], index: 1, kind: input, shape index: {}]
  %s2 = inlined_call_operand.vmem [shape: f32[1,128], index: 2, kind: input, shape index: {}]
  %s3 = inlined_call_operand.vmem [shape: f32[128,128], index: 3, kind: input, shape index: {}]
  %s4 = inlined_call_operand.vmem [shape: f32[1,128], index: 4, kind: input, shape index: {}]
  %s5 = inlined_call_operand.hbm [shape: f32[16,128], index: 5, kind: output, shape index: {}]
  %s6 = sld [smem:[#allocation0]]
  $region53: #{inner_model_forward.1} parent=0
    _
  %s8 = ssub.s32 1, %s6
  %s9 = scalar_select 0, %s8, %s6
  $region1: #{inner_model_forward.1} parent=0
    #allocation2 [shape = 'u8[8192]{0}', space=vmem, size = 0x2000, scoped, tag = 'output window, operand 0']
    #allocation3 [shape = 's32[2]{0}', space=sflag, size = 0x8, scoped, tag = 'scoped memory for inner_model_forward.1']
    %10 = vsyncpa [#allocation3], 0
    %s11 = scalar_lea.sflag [#allocation3], 1
    %12 = vsyncpa %s11, 0
    loop: start=0, step=1, limit=4
    $region2: #{inner_model_forward.1} parent=1 // loop_pre_header
      _
    $region3: #{inner_model_forward.1} parent=1 // loop_header
      %s14 = sphi 0, %s18
      %p15 = scmp.ge.s32.totalorder %s14, 4
      %s24 = sphi 0, %s26
      %s27 = sphi 0, %s24
      %s28 = sphi 0, %s27
      %s44 = sphi 0, %s28
      %s48 = sphi 0, %s48
      %s50 = sphi 0, %s48
      %s51 = sphi 0, %s50
      %s65 = sphi 0, %s51
      %s69 = sphi 0, %s69
      %s71 = sphi 0, %s69
      %s72 = sphi 0, %s71
      %s86 = sphi 0, %s72
      %s90 = sphi 0, %s90
      %s92 = sphi 0, %s90
      %s93 = sphi 0, %s92
      %s107 = sphi 0, %s93
      %s111 = sphi 0, %s111
      %s113 = sphi 0, %s111
      %s114 = sphi 0, %s113
      %s128 = sphi 0, %s114
      %s134 = sphi 0, %s136
      %s137 = sphi 0, %s134
      %s138 = sphi 0, %s137
      %s154 = sphi 0, %s138
    $region4: #{inner_model_forward.1} parent=1 // loop_header_branch
      %17 = sbr.rel (%p15) target = $region8
    $region5: #{inner_model_forward.1} parent=1 // loop_body
      %s19 = ssub.s32 %s14, 1
      %s20 = ssub.s32 %s14, 2
      %s21 = sadd.s32 %s14, 1
      %s22 = ssub.s32 %s14, %s21
      %p23 = scmp.eq.s32.totalorder %s22, 0
      %s25 = sadd.s32 %s24, 1
      %s26 = scalar_select %p23, %s24, %s25
      %p29 = pneg %p23
      %p30 = scmp.eq.s32.totalorder %s14, 1
      %p31 = por %p29, %p30
      %p32 = scmp.ne.s32.totalorder %s24, %s27
      %p33 = scmp.eq.s32.totalorder %s14, 0
      %p34 = por %p32, %p33
      %p35 = scmp.ne.s32.totalorder %s24, %s27
      %p36 = scmp.eq.s32.totalorder %s19, 1
      %p37 = por %p35, %p36
      %p38 = scmp.ne.s32.totalorder %s27, %s28
      %p39 = scmp.eq.s32.totalorder %s19, 0
      %p40 = por %p38, %p39
      %p41 = scmp.ne.s32.totalorder %s27, %s28
      %p42 = scmp.eq.s32.totalorder %s20, 1
      %p43 = por %p41, %p42
      %p45 = scmp.ne.s32.totalorder %s28, %s44
      %p46 = scmp.eq.s32.totalorder %s20, 0
      %p47 = por %p45, %p46
      %s49 = sadd.s32 %s48, 1
      %p52 = scmp.eq.s32.totalorder %s14, 1
      %p53 = scmp.ne.s32.totalorder %s48, %s50
      %p54 = scmp.eq.s32.totalorder %s14, 0
      %p55 = por %p53, %p54
      %p56 = scmp.ne.s32.totalorder %s48, %s50
      %p57 = scmp.eq.s32.totalorder %s19, 1
      %p58 = por %p56, %p57
      %p59 = scmp.ne.s32.totalorder %s50, %s51
      %p60 = scmp.eq.s32.totalorder %s19, 0
      %p61 = por %p59, %p60
      %p62 = scmp.ne.s32.totalorder %s50, %s51
      %p63 = scmp.eq.s32.totalorder %s20, 1
      %p64 = por %p62, %p63
      %p66 = scmp.ne.s32.totalorder %s51, %s65
      %p67 = scmp.eq.s32.totalorder %s20, 0
      %p68 = por %p66, %p67
      %s70 = sadd.s32 %s69, 1
      %p73 = scmp.eq.s32.totalorder %s14, 1
      %p74 = scmp.ne.s32.totalorder %s69, %s71
      %p75 = scmp.eq.s32.totalorder %s14, 0
      %p76 = por %p74, %p75
      %p77 = scmp.ne.s32.totalorder %s69, %s71
      %p78 = scmp.eq.s32.totalorder %s19, 1
      %p79 = por %p77, %p78
      %p80 = scmp.ne.s32.totalorder %s71, %s72
      %p81 = scmp.eq.s32.totalorder %s19, 0
      %p82 = por %p80, %p81
      %p83 = scmp.ne.s32.totalorder %s71, %s72
      %p84 = scmp.eq.s32.totalorder %s20, 1
      %p85 = por %p83, %p84
      %p87 = scmp.ne.s32.totalorder %s72, %s86
      %p88 = scmp.eq.s32.totalorder %s20, 0
      %p89 = por %p87, %p88
      %s91 = sadd.s32 %s90, 1
      %p94 = scmp.eq.s32.totalorder %s14, 1
      %p95 = scmp.ne.s32.totalorder %s90, %s92
      %p96 = scmp.eq.s32.totalorder %s14, 0
      %p97 = por %p95, %p96
      %p98 = scmp.ne.s32.totalorder %s90, %s92
      %p99 = scmp.eq.s32.totalorder %s19, 1
      %p100 = por %p98, %p99
      %p101 = scmp.ne.s32.totalorder %s92, %s93
      %p102 = scmp.eq.s32.totalorder %s19, 0
      %p103 = por %p101, %p102
      %p104 = scmp.ne.s32.totalorder %s92, %s93
      %p105 = scmp.eq.s32.totalorder %s20, 1
      %p106 = por %p104, %p105
      %p108 = scmp.ne.s32.totalorder %s93, %s107
      %p109 = scmp.eq.s32.totalorder %s20, 0
      %p110 = por %p108, %p109
      %s112 = sadd.s32 %s111, 1
      %p115 = scmp.eq.s32.totalorder %s14, 1
      %p116 = scmp.ne.s32.totalorder %s111, %s113
      %p117 = scmp.eq.s32.totalorder %s14, 0
      %p118 = por %p116, %p117
      %p119 = scmp.ne.s32.totalorder %s111, %s113
      %p120 = scmp.eq.s32.totalorder %s19, 1
      %p121 = por %p119, %p120
      %p122 = scmp.ne.s32.totalorder %s113, %s114
      %p123 = scmp.eq.s32.totalorder %s19, 0
      %p124 = por %p122, %p123
      %p125 = scmp.ne.s32.totalorder %s113, %s114
      %p126 = scmp.eq.s32.totalorder %s20, 1
      %p127 = por %p125, %p126
      %p129 = scmp.ne.s32.totalorder %s114, %s128
      %p130 = scmp.eq.s32.totalorder %s20, 0
      %p131 = por %p129, %p130
      %s132 = ssub.s32 %s14, %s21
      %p133 = scmp.eq.s32.totalorder %s132, 0
      %s135 = sadd.s32 %s134, 1
      %s136 = scalar_select %p133, %s134, %s135
      %p139 = pneg %p133
      %p140 = scmp.eq.s32.totalorder %s14, 1
      %p141 = por %p139, %p140
      %p142 = scmp.ne.s32.totalorder %s134, %s137
      %p143 = scmp.eq.s32.totalorder %s14, 0
      %p144 = por %p142, %p143
      %p145 = scmp.ne.s32.totalorder %s134, %s137
      %p146 = scmp.eq.s32.totalorder %s19, 1
      %p147 = por %p145, %p146
      %p148 = scmp.ne.s32.totalorder %s137, %s138
      %p149 = scmp.eq.s32.totalorder %s19, 0
      %p150 = por %p148, %p149
      %p151 = scmp.ne.s32.totalorder %s137, %s138
      %p152 = scmp.eq.s32.totalorder %s20, 1
      %p153 = por %p151, %p152
      %p155 = scmp.ne.s32.totalorder %s138, %s154
      %p156 = scmp.eq.s32.totalorder %s20, 0
      %p157 = por %p155, %p156
      %p158 = scmp.le.s32.totalorder 1, %s14
      %p159 = scmp.lt.s32.totalorder %s14, 3
      %p160 = pnand %p158, %p159
      %p161 = pneg %p160
      // Predicated region
      $region9: #{inner_model_forward.1} parent=5 // pred_check
        _
      $region10: #{inner_model_forward.1} parent=5 // pred_check_branch
        %163 = sbr.rel (%p160) target = $region12
      $region11: #{inner_model_forward.1} parent=5 // pred_region
        %s164 = ssub.s32 %s14, 1
        // Predicated region
        $region13: #{inner_model_forward.1} parent=11 // pred_check
          %p165 = pneg %p61
        $region14: #{inner_model_forward.1} parent=11 // pred_check_branch
          %167 = sbr.rel (%p165) target = $region16
        $region15: #{inner_model_forward.1} parent=11 // pred_region
          _
        $region16: #{inner_model_forward.1} parent=11 // pred_fallthru
          _
        // Predicated region
        $region17: #{inner_model_forward.1} parent=11 // pred_check
          %p168 = pneg %p82
        $region18: #{inner_model_forward.1} parent=11 // pred_check_branch
          %170 = sbr.rel (%p168) target = $region20
        $region19: #{inner_model_forward.1} parent=11 // pred_region
          _
        $region20: #{inner_model_forward.1} parent=11 // pred_fallthru
          _
        // Predicated region
        $region21: #{inner_model_forward.1} parent=11 // pred_check
          %p171 = pneg %p103
        $region22: #{inner_model_forward.1} parent=11 // pred_check_branch
          %173 = sbr.rel (%p171) target = $region24
        $region23: #{inner_model_forward.1} parent=11 // pred_region
          _
        $region24: #{inner_model_forward.1} parent=11 // pred_fallthru
          _
        // Predicated region
        $region25: #{inner_model_forward.1} parent=11 // pred_check
          %p174 = pneg %p124
        $region26: #{inner_model_forward.1} parent=11 // pred_check_branch
          %176 = sbr.rel (%p174) target = $region28
        $region27: #{inner_model_forward.1} parent=11 // pred_region
          _
        $region28: #{inner_model_forward.1} parent=11 // pred_fallthru
          _
      $region12: #{inner_model_forward.1} parent=5 // pred_fallthru
        _
      %p177 = scmp.lt.s32.totalorder %s14, 2
      // Predicated region
      $region29: #{inner_model_forward.1} parent=5 // pred_check
        %p178 = pneg %p177
      $region30: #{inner_model_forward.1} parent=5 // pred_check_branch
        %180 = sbr.rel (%p178) target = $region32
      $region31: #{inner_model_forward.1} parent=5 // pred_region
        // Predicated region
        $region33: #{inner_model_forward.1} parent=31 // pred_check
          %p181 = pneg %p34
        $region34: #{inner_model_forward.1} parent=31 // pred_check_branch
          %183 = sbr.rel (%p181) target = $region36
        $region35: #{inner_model_forward.1} parent=31 // pred_region
          %s184 = smul.u32 8, %s14
          %p185 = scmp.lt.s32.totalorder %s184, 15
          %s186 = scalar_select %p185, %s184, 15
          %s187 = smul.addr %s186, 32
          %s188 = smul.addr %s187, 4
          %s189 = scalar_lea.vmem %s0, %s188
          %s190 = smul.u32 8, %s14
        $region36: #{inner_model_forward.1} parent=31 // pred_fallthru
          _
      $region32: #{inner_model_forward.1} parent=5 // pred_fallthru
        _
      %p191 = scmp.le.s32.totalorder 1, %s14
      %p192 = scmp.lt.s32.totalorder %s14, 3
      %p193 = pnand %p191, %p192
      %p194 = pneg %p193
      // Predicated region
      $region37: #{inner_model_forward.1} parent=5 // pred_check
        _
      $region38: #{inner_model_forward.1} parent=5 // pred_check_branch
        %196 = sbr.rel (%p193) target = $region40
      $region39: #{inner_model_forward.1} parent=5 // pred_region
        %s197 = ssub.s32 %s14, 1
        %s198 = smul.u32 8, %s19
        %p199 = scmp.lt.s32.totalorder %s198, 15
        %s200 = scalar_select %p199, %s198, 15
        %s201 = smul.addr %s200, 32
        %s202 = smul.addr %s201, 4
        %s203 = scalar_lea.vmem %s0, %s202
        %p204 = pneg %p40
        %p205 = pneg %p37
        %p206 = pneg %p61
        %p207 = pneg %p58
        %p208 = pneg %p82
        %p209 = pneg %p79
        %p210 = pneg %p103
        %p211 = pneg %p100
        %p212 = pneg %p124
        %p213 = pneg %p121
        %p214 = pneg %p150
        %p215 = pneg %p147
        %s216 = sand.u32 %s137, 1
        %s217 = scalar_lea.sflag [#allocation3], %s216
        %s218 = sand.u32 %s137, 1
        %s219 = smul.addr %s218, 8
        %s220 = scalar_lea.vmem [#allocation2], %s219
        %s221 = smul.u32 8, %s19
        %p222 = scmp.lt.s32.totalorder %s221, 15
        %s223 = scalar_select %p222, %s221, 15
        %s224 = smul.addr %s223, 32
        %s225 = smul.addr %s224, 4
        %s226 = scalar_lea.vmem %s0, %s225
        %s227 = smul.u32 8, %s19
        %v229 = vld [vmem:[%s1] sm:$0xf]
        %v230 = vld [vmem:[%s1 + $0x4] sm:$0xf]
        %v231 = vld [vmem:[%s1 + $0x8] sm:$0xf]
        %v232 = vld [vmem:[%s1 + $0xc] sm:$0xf]
        %v233 = vld [vmem:[%s2] sm:$0x1]
        %v234 = vld [vmem:[%s226] sm:$0xf]
        %v235 = vld [vmem:[%s226 + $0x4] sm:$0xf]
        %v236 = vld [vmem:[%s226 + $0x8] sm:$0xf]
        %v237 = vld [vmem:[%s226 + $0xc] sm:$0xf]
        %v238 = vld [vmem:[%s226 + $0x10] sm:$0xf]
        %v239 = vld [vmem:[%s226 + $0x14] sm:$0xf]
        %v240 = vld [vmem:[%s226 + $0x18] sm:$0xf]
        %v241 = vld [vmem:[%s226 + $0x1c] sm:$0xf]
        %v242 = vld [vmem:[%s226 + $0x20] sm:$0xf]
        %v243 = vld [vmem:[%s226 + $0x24] sm:$0xf]
        %v244 = vld [vmem:[%s226 + $0x28] sm:$0xf]
        %v245 = vld [vmem:[%s226 + $0x2c] sm:$0xf]
        %v246 = vld [vmem:[%s226 + $0x30] sm:$0xf]
        %v247 = vld [vmem:[%s226 + $0x34] sm:$0xf]
        %v248 = vld [vmem:[%s226 + $0x38] sm:$0xf]
        %v249 = vld [vmem:[%s226 + $0x3c] sm:$0xf]
        %v250 = vld [vmem:[%s226 + $0x40] sm:$0xf]
        %v251 = vld [vmem:[%s226 + $0x44] sm:$0xf]
        %v252 = vld [vmem:[%s226 + $0x48] sm:$0xf]
        %v253 = vld [vmem:[%s226 + $0x4c] sm:$0xf]
        %v254 = vld [vmem:[%s226 + $0x50] sm:$0xf]
        %v255 = vld [vmem:[%s226 + $0x54] sm:$0xf]
        %v256 = vld [vmem:[%s226 + $0x58] sm:$0xf]
        %v257 = vld [vmem:[%s226 + $0x5c] sm:$0xf]
        %v258 = vld [vmem:[%s226 + $0x60] sm:$0xf]
        %v259 = vld [vmem:[%s226 + $0x64] sm:$0xf]
        %v260 = vld [vmem:[%s226 + $0x68] sm:$0xf]
        %v261 = vld [vmem:[%s226 + $0x6c] sm:$0xf]
        %v262 = vld [vmem:[%s226 + $0x70] sm:$0xf]
        %v263 = vld [vmem:[%s226 + $0x74] sm:$0xf]
        %v264 = vld [vmem:[%s226 + $0x78] sm:$0xf]
        %v265 = vld [vmem:[%s226 + $0x7c] sm:$0xf]
        %v267 = vperm.slane %v233, 0
        %v301 = vunpack.c.l.b16 %v234
        %v302 = vunpack.c.l.b16 %v235
        %v303 = vunpack.c.l.b16 %v236
        %v304 = vunpack.c.l.b16 %v237
        %v305 = vunpack.c.l.b16 %v238
        %v306 = vunpack.c.l.b16 %v239
        %v307 = vunpack.c.l.b16 %v240
        %v308 = vunpack.c.l.b16 %v241
        %v309 = vunpack.c.l.b16 %v242
        %v310 = vunpack.c.l.b16 %v243
        %v311 = vunpack.c.l.b16 %v244
        %v312 = vunpack.c.l.b16 %v245
        %v313 = vunpack.c.l.b16 %v246
        %v314 = vunpack.c.l.b16 %v247
        %v315 = vunpack.c.l.b16 %v248
        %v316 = vunpack.c.l.b16 %v249
        %v317 = vunpack.c.l.b16 %v250
        %v318 = vunpack.c.l.b16 %v251
        %v319 = vunpack.c.l.b16 %v252
        %v320 = vunpack.c.l.b16 %v253
        %v321 = vunpack.c.l.b16 %v254
        %v322 = vunpack.c.l.b16 %v255
        %v323 = vunpack.c.l.b16 %v256
        %v324 = vunpack.c.l.b16 %v257
        %v325 = vunpack.c.l.b16 %v258
        %v326 = vunpack.c.l.b16 %v259
        %v327 = vunpack.c.l.b16 %v260
        %v328 = vunpack.c.l.b16 %v261
        %v329 = vunpack.c.l.b16 %v262
        %v330 = vunpack.c.l.b16 %v263
        %v331 = vunpack.c.l.b16 %v264
        %v332 = vunpack.c.l.b16 %v265
        %v333 = vpack.c.b16 %v302, %v301
        %v334 = vpack.c.b16 %v304, %v303
        %v335 = vpack.c.b16 %v306, %v305
        %v336 = vpack.c.b16 %v308, %v307
        %v337 = vpack.c.b16 %v310, %v309
        %v338 = vpack.c.b16 %v312, %v311
        %v339 = vpack.c.b16 %v314, %v313
        %v340 = vpack.c.b16 %v316, %v315
        %v341 = vpack.c.b16 %v318, %v317
        %v342 = vpack.c.b16 %v320, %v319
        %v343 = vpack.c.b16 %v322, %v321
        %v344 = vpack.c.b16 %v324, %v323
        %v345 = vpack.c.b16 %v326, %v325
        %v346 = vpack.c.b16 %v328, %v327
        %v347 = vpack.c.b16 %v330, %v329
        %v348 = vpack.c.b16 %v332, %v331
        %v353 = vunpack.c.l.b16 %v229
        %v354 = vunpack.c.l.b16 %v230
        %v355 = vunpack.c.l.b16 %v231
        %v356 = vunpack.c.l.b16 %v232
        %v357 = vpack.c.b16 %v354, %v353
        %v358 = vpack.c.b16 %v356, %v355
        %vm361 = vcmask 261120
        %v363 = vsel %vm361, %v333, 0
        %v366 = vsel %vm361, %v334, 0
        %v369 = vsel %vm361, %v335, 0
        %v372 = vsel %vm361, %v336, 0
        %v375 = vsel %vm361, %v337, 0
        %v378 = vsel %vm361, %v338, 0
        %v381 = vsel %vm361, %v339, 0
        %v384 = vsel %vm361, %v340, 0
        %v387 = vsel %vm361, %v341, 0
        %v390 = vsel %vm361, %v342, 0
        %v393 = vsel %vm361, %v343, 0
        %v396 = vsel %vm361, %v344, 0
        %v399 = vsel %vm361, %v345, 0
        %v402 = vsel %vm361, %v346, 0
        %v405 = vsel %vm361, %v347, 0
        %v408 = vsel %vm361, %v348, 0
        %410 = vmatpush.bf16.msra.mxu0 0
        %411 = vmatpush.bf16.msra.mxu0 0
        %412 = vmatpush.bf16.msra.mxu0 0
        %413 = vmatpush.bf16.msra.mxu0 0
        %414 = vmatpush.bf16.msra.mxu0 0
        %415 = vmatpush.bf16.msra.mxu0 0
        %416 = vmatpush.bf16.msra.mxu0 %v358
        %417 = vmatpush.bf16.msra.mxu0 %v357
        %418 = vmatmul.bf16.gmra.mxu0 %v363
        %v419 = vpop.f32.mrf.mxu0
        %v420 = vadd.f32 %v267, %v419
        %v421 = vpop.f32.mrf.mxu0
        %v422 = vadd.f32 %v267, %v421
        %423 = vmatmul.bf16.gmra.mxu0 %v366
        %v424 = vpop.f32.mrf.mxu0
        %v425 = vadd.f32 %v267, %v424
        %v426 = vpop.f32.mrf.mxu0
        %v427 = vadd.f32 %v267, %v426
        %428 = vmatmul.bf16.gmra.mxu0 %v369
        %v429 = vpop.f32.mrf.mxu0
        %v430 = vadd.f32 %v267, %v429
        %v431 = vpop.f32.mrf.mxu0
        %v432 = vadd.f32 %v267, %v431
        %433 = vmatmul.bf16.gmra.mxu0 %v372
        %v434 = vpop.f32.mrf.mxu0
        %v435 = vadd.f32 %v267, %v434
        %v436 = vpop.f32.mrf.mxu0
        %v437 = vadd.f32 %v267, %v436
        %438 = vmatmul.bf16.gmra.mxu0 %v375
        %v439 = vpop.f32.mrf.mxu0
        %v440 = vadd.f32 %v267, %v439
        %v441 = vpop.f32.mrf.mxu0
        %v442 = vadd.f32 %v267, %v441
        %443 = vmatmul.bf16.gmra.mxu0 %v378
        %v444 = vpop.f32.mrf.mxu0
        %v445 = vadd.f32 %v267, %v444
        %v446 = vpop.f32.mrf.mxu0
        %v447 = vadd.f32 %v267, %v446
        %448 = vmatmul.bf16.gmra.mxu0 %v381
        %v449 = vpop.f32.mrf.mxu0
        %v450 = vadd.f32 %v267, %v449
        %v451 = vpop.f32.mrf.mxu0
        %v452 = vadd.f32 %v267, %v451
        %453 = vmatmul.bf16.gmra.mxu0 %v384
        %v454 = vpop.f32.mrf.mxu0
        %v455 = vadd.f32 %v267, %v454
        %v456 = vpop.f32.mrf.mxu0
        %v457 = vadd.f32 %v267, %v456
        %458 = vmatmul.bf16.gmra.mxu0 %v387
        %v459 = vpop.f32.mrf.mxu0
        %v460 = vadd.f32 %v267, %v459
        %v461 = vpop.f32.mrf.mxu0
        %v462 = vadd.f32 %v267, %v461
        %463 = vmatmul.bf16.gmra.mxu0 %v390
        %v464 = vpop.f32.mrf.mxu0
        %v465 = vadd.f32 %v267, %v464
        %v466 = vpop.f32.mrf.mxu0
        %v467 = vadd.f32 %v267, %v466
        %468 = vmatmul.bf16.gmra.mxu0 %v393
        %v469 = vpop.f32.mrf.mxu0
        %v470 = vadd.f32 %v267, %v469
        %v471 = vpop.f32.mrf.mxu0
        %v472 = vadd.f32 %v267, %v471
        %473 = vmatmul.bf16.gmra.mxu0 %v396
        %v474 = vpop.f32.mrf.mxu0
        %v475 = vadd.f32 %v267, %v474
        %v476 = vpop.f32.mrf.mxu0
        %v477 = vadd.f32 %v267, %v476
        %478 = vmatmul.bf16.gmra.mxu0 %v399
        %v479 = vpop.f32.mrf.mxu0
        %v480 = vadd.f32 %v267, %v479
        %v481 = vpop.f32.mrf.mxu0
        %v482 = vadd.f32 %v267, %v481
        %483 = vmatmul.bf16.gmra.mxu0 %v402
        %v484 = vpop.f32.mrf.mxu0
        %v485 = vadd.f32 %v267, %v484
        %v486 = vpop.f32.mrf.mxu0
        %v487 = vadd.f32 %v267, %v486
        %488 = vmatmul.bf16.gmra.mxu0 %v405
        %v489 = vpop.f32.mrf.mxu0
        %v490 = vadd.f32 %v267, %v489
        %v491 = vpop.f32.mrf.mxu0
        %v492 = vadd.f32 %v267, %v491
        %493 = vmatmul.bf16.gmra.mxu0 %v408
        %v494 = vpop.f32.mrf.mxu0
        %v495 = vadd.f32 %v267, %v494
        %v496 = vpop.f32.mrf.mxu0
        %v497 = vadd.f32 %v267, %v496
        %498 = vdwg.mxu0
        %v499 = vmax.f32 %v420, 0.0
        %v500 = vmax.f32 %v422, 0.0
        %v501 = vmax.f32 %v425, 0.0
        %v502 = vmax.f32 %v427, 0.0
        %v503 = vmax.f32 %v430, 0.0
        %v504 = vmax.f32 %v432, 0.0
        %v505 = vmax.f32 %v435, 0.0
        %v506 = vmax.f32 %v437, 0.0
        %v507 = vmax.f32 %v440, 0.0
        %v508 = vmax.f32 %v442, 0.0
        %v509 = vmax.f32 %v445, 0.0
        %v510 = vmax.f32 %v447, 0.0
        %v511 = vmax.f32 %v450, 0.0
        %v512 = vmax.f32 %v452, 0.0
        %v513 = vmax.f32 %v455, 0.0
        %v514 = vmax.f32 %v457, 0.0
        %v515 = vmax.f32 %v460, 0.0
        %v516 = vmax.f32 %v462, 0.0
        %v517 = vmax.f32 %v465, 0.0
        %v518 = vmax.f32 %v467, 0.0
        %v519 = vmax.f32 %v470, 0.0
        %v520 = vmax.f32 %v472, 0.0
        %v521 = vmax.f32 %v475, 0.0
        %v522 = vmax.f32 %v477, 0.0
        %v523 = vmax.f32 %v480, 0.0
        %v524 = vmax.f32 %v482, 0.0
        %v525 = vmax.f32 %v485, 0.0
        %v526 = vmax.f32 %v487, 0.0
        %v527 = vmax.f32 %v490, 0.0
        %v528 = vmax.f32 %v492, 0.0
        %v529 = vmax.f32 %v495, 0.0
        %v530 = vmax.f32 %v497, 0.0
        %v531 = vadd.f32 %v499, %v500
        %v532 = vadd.f32 %v531, %v501
        %v533 = vadd.f32 %v532, %v502
        %v534 = vadd.f32 %v533, %v503
        %v535 = vadd.f32 %v534, %v504
        %v536 = vadd.f32 %v535, %v505
        %v537 = vadd.f32 %v536, %v506
        %v538 = vadd.f32 %v537, %v507
        %v539 = vadd.f32 %v538, %v508
        %v540 = vadd.f32 %v539, %v509
        %v541 = vadd.f32 %v540, %v510
        %v542 = vadd.f32 %v541, %v511
        %v543 = vadd.f32 %v542, %v512
        %v544 = vadd.f32 %v543, %v513
        %v545 = vadd.f32 %v544, %v514
        %v546 = vadd.f32 %v545, %v515
        %v547 = vadd.f32 %v546, %v516
        %v548 = vadd.f32 %v547, %v517
        %v549 = vadd.f32 %v548, %v518
        %v550 = vadd.f32 %v549, %v519
        %v551 = vadd.f32 %v550, %v520
        %v552 = vadd.f32 %v551, %v521
        %v553 = vadd.f32 %v552, %v522
        %v554 = vadd.f32 %v553, %v523
        %v555 = vadd.f32 %v554, %v524
        %v556 = vadd.f32 %v555, %v525
        %v557 = vadd.f32 %v556, %v526
        %v558 = vadd.f32 %v557, %v527
        %v559 = vadd.f32 %v558, %v528
        %v560 = vadd.f32 %v559, %v529
        %v561 = vadd.f32 %v560, %v530
        %v562 = vrot.slane %v561, 4
        %v563 = vadd.f32 %v561, %v562
        %v564 = vrot.slane %v563, 2
        %v565 = vadd.f32 %v563, %v564
        %v566 = vrot.slane %v565, 1
        %v567 = vadd.f32 %v565, %v566
        %v568 = vmul.f32 %v567, 0.00390625
        %s569 = scalar_lea.vmem %s226, 128
        %v570 = vld [vmem:[%s569] sm:$0xf]
        %v571 = vld [vmem:[%s569 + $0x4] sm:$0xf]
        %v572 = vld [vmem:[%s569 + $0x8] sm:$0xf]
        %v573 = vld [vmem:[%s569 + $0xc] sm:$0xf]
        %v574 = vld [vmem:[%s569 + $0x10] sm:$0xf]
        %v575 = vld [vmem:[%s569 + $0x14] sm:$0xf]
        %v576 = vld [vmem:[%s569 + $0x18] sm:$0xf]
        %v577 = vld [vmem:[%s569 + $0x1c] sm:$0xf]
        %v578 = vld [vmem:[%s569 + $0x20] sm:$0xf]
        %v579 = vld [vmem:[%s569 + $0x24] sm:$0xf]
        %v580 = vld [vmem:[%s569 + $0x28] sm:$0xf]
        %v581 = vld [vmem:[%s569 + $0x2c] sm:$0xf]
        %v582 = vld [vmem:[%s569 + $0x30] sm:$0xf]
        %v583 = vld [vmem:[%s569 + $0x34] sm:$0xf]
        %v584 = vld [vmem:[%s569 + $0x38] sm:$0xf]
        %v585 = vld [vmem:[%s569 + $0x3c] sm:$0xf]
        %v586 = vld [vmem:[%s569 + $0x40] sm:$0xf]
        %v587 = vld [vmem:[%s569 + $0x44] sm:$0xf]
        %v588 = vld [vmem:[%s569 + $0x48] sm:$0xf]
        %v589 = vld [vmem:[%s569 + $0x4c] sm:$0xf]
        %v590 = vld [vmem:[%s569 + $0x50] sm:$0xf]
        %v591 = vld [vmem:[%s569 + $0x54] sm:$0xf]
        %v592 = vld [vmem:[%s569 + $0x58] sm:$0xf]
        %v593 = vld [vmem:[%s569 + $0x5c] sm:$0xf]
        %v594 = vld [vmem:[%s569 + $0x60] sm:$0xf]
        %v595 = vld [vmem:[%s569 + $0x64] sm:$0xf]
        %v596 = vld [vmem:[%s569 + $0x68] sm:$0xf]
        %v597 = vld [vmem:[%s569 + $0x6c] sm:$0xf]
        %v598 = vld [vmem:[%s569 + $0x70] sm:$0xf]
        %v599 = vld [vmem:[%s569 + $0x74] sm:$0xf]
        %v600 = vld [vmem:[%s569 + $0x78] sm:$0xf]
        %v601 = vld [vmem:[%s569 + $0x7c] sm:$0xf]
        %v634 = vunpack.c.l.b16 %v570
        %v635 = vunpack.c.l.b16 %v571
        %v636 = vunpack.c.l.b16 %v572
        %v637 = vunpack.c.l.b16 %v573
        %v638 = vunpack.c.l.b16 %v574
        %v639 = vunpack.c.l.b16 %v575
        %v640 = vunpack.c.l.b16 %v576
        %v641 = vunpack.c.l.b16 %v577
        %v642 = vunpack.c.l.b16 %v578
        %v643 = vunpack.c.l.b16 %v579
        %v644 = vunpack.c.l.b16 %v580
        %v645 = vunpack.c.l.b16 %v581
        %v646 = vunpack.c.l.b16 %v582
        %v647 = vunpack.c.l.b16 %v583
        %v648 = vunpack.c.l.b16 %v584
        %v649 = vunpack.c.l.b16 %v585
        %v650 = vunpack.c.l.b16 %v586
        %v651 = vunpack.c.l.b16 %v587
        %v652 = vunpack.c.l.b16 %v588
        %v653 = vunpack.c.l.b16 %v589
        %v654 = vunpack.c.l.b16 %v590
        %v655 = vunpack.c.l.b16 %v591
        %v656 = vunpack.c.l.b16 %v592
        %v657 = vunpack.c.l.b16 %v593
        %v658 = vunpack.c.l.b16 %v594
        %v659 = vunpack.c.l.b16 %v595
        %v660 = vunpack.c.l.b16 %v596
        %v661 = vunpack.c.l.b16 %v597
        %v662 = vunpack.c.l.b16 %v598
        %v663 = vunpack.c.l.b16 %v599
        %v664 = vunpack.c.l.b16 %v600
        %v665 = vunpack.c.l.b16 %v601
        %v666 = vpack.c.b16 %v635, %v634
        %v667 = vpack.c.b16 %v637, %v636
        %v668 = vpack.c.b16 %v639, %v638
        %v669 = vpack.c.b16 %v641, %v640
        %v670 = vpack.c.b16 %v643, %v642
        %v671 = vpack.c.b16 %v645, %v644
        %v672 = vpack.c.b16 %v647, %v646
        %v673 = vpack.c.b16 %v649, %v648
        %v674 = vpack.c.b16 %v651, %v650
        %v675 = vpack.c.b16 %v653, %v652
        %v676 = vpack.c.b16 %v655, %v654
        %v677 = vpack.c.b16 %v657, %v656
        %v678 = vpack.c.b16 %v659, %v658
        %v679 = vpack.c.b16 %v661, %v660
        %v680 = vpack.c.b16 %v663, %v662
        %v681 = vpack.c.b16 %v665, %v664
        %v683 = vsel %vm361, %v666, 0
        %v686 = vsel %vm361, %v667, 0
        %v689 = vsel %vm361, %v668, 0
        %v692 = vsel %vm361, %v669, 0
        %v695 = vsel %vm361, %v670, 0
        %v698 = vsel %vm361, %v671, 0
        %v701 = vsel %vm361, %v672, 0
        %v704 = vsel %vm361, %v673, 0
        %v707 = vsel %vm361, %v674, 0
        %v710 = vsel %vm361, %v675, 0
        %v713 = vsel %vm361, %v676, 0
        %v716 = vsel %vm361, %v677, 0
        %v719 = vsel %vm361, %v678, 0
        %v722 = vsel %vm361, %v679, 0
        %v725 = vsel %vm361, %v680, 0
        %v728 = vsel %vm361, %v681, 0
        %730 = vmatpush.bf16.msra.mxu0 0
        %731 = vmatpush.bf16.msra.mxu0 0
        %732 = vmatpush.bf16.msra.mxu0 0
        %733 = vmatpush.bf16.msra.mxu0 0
        %734 = vmatpush.bf16.msra.mxu0 0
        %735 = vmatpush.bf16.msra.mxu0 0
        %736 = vmatpush.bf16.msra.mxu0 %v358
        %737 = vmatpush.bf16.msra.mxu0 %v357
        %738 = vmatmul.bf16.gmra.mxu0 %v683
        %v739 = vpop.f32.mrf.mxu0
        %v740 = vadd.f32 %v267, %v739
        %v741 = vpop.f32.mrf.mxu0
        %v742 = vadd.f32 %v267, %v741
        %743 = vmatmul.bf16.gmra.mxu0 %v686
        %v744 = vpop.f32.mrf.mxu0
        %v745 = vadd.f32 %v267, %v744
        %v746 = vpop.f32.mrf.mxu0
        %v747 = vadd.f32 %v267, %v746
        %748 = vmatmul.bf16.gmra.mxu0 %v689
        %v749 = vpop.f32.mrf.mxu0
        %v750 = vadd.f32 %v267, %v749
        %v751 = vpop.f32.mrf.mxu0
        %v752 = vadd.f32 %v267, %v751
        %753 = vmatmul.bf16.gmra.mxu0 %v692
        %v754 = vpop.f32.mrf.mxu0
        %v755 = vadd.f32 %v267, %v754
        %v756 = vpop.f32.mrf.mxu0
        %v757 = vadd.f32 %v267, %v756
        %758 = vmatmul.bf16.gmra.mxu0 %v695
        %v759 = vpop.f32.mrf.mxu0
        %v760 = vadd.f32 %v267, %v759
        %v761 = vpop.f32.mrf.mxu0
        %v762 = vadd.f32 %v267, %v761
        %763 = vmatmul.bf16.gmra.mxu0 %v698
        %v764 = vpop.f32.mrf.mxu0
        %v765 = vadd.f32 %v267, %v764
        %v766 = vpop.f32.mrf.mxu0
        %v767 = vadd.f32 %v267, %v766
        %768 = vmatmul.bf16.gmra.mxu0 %v701
        %v769 = vpop.f32.mrf.mxu0
        %v770 = vadd.f32 %v267, %v769
        %v771 = vpop.f32.mrf.mxu0
        %v772 = vadd.f32 %v267, %v771
        %773 = vmatmul.bf16.gmra.mxu0 %v704
        %v774 = vpop.f32.mrf.mxu0
        %v775 = vadd.f32 %v267, %v774
        %v776 = vpop.f32.mrf.mxu0
        %v777 = vadd.f32 %v267, %v776
        %778 = vmatmul.bf16.gmra.mxu0 %v707
        %v779 = vpop.f32.mrf.mxu0
        %v780 = vadd.f32 %v267, %v779
        %v781 = vpop.f32.mrf.mxu0
        %v782 = vadd.f32 %v267, %v781
        %783 = vmatmul.bf16.gmra.mxu0 %v710
        %v784 = vpop.f32.mrf.mxu0
        %v785 = vadd.f32 %v267, %v784
        %v786 = vpop.f32.mrf.mxu0
        %v787 = vadd.f32 %v267, %v786
        %788 = vmatmul.bf16.gmra.mxu0 %v713
        %v789 = vpop.f32.mrf.mxu0
        %v790 = vadd.f32 %v267, %v789
        %v791 = vpop.f32.mrf.mxu0
        %v792 = vadd.f32 %v267, %v791
        %793 = vmatmul.bf16.gmra.mxu0 %v716
        %v794 = vpop.f32.mrf.mxu0
        %v795 = vadd.f32 %v267, %v794
        %v796 = vpop.f32.mrf.mxu0
        %v797 = vadd.f32 %v267, %v796
        %798 = vmatmul.bf16.gmra.mxu0 %v719
        %v799 = vpop.f32.mrf.mxu0
        %v800 = vadd.f32 %v267, %v799
        %v801 = vpop.f32.mrf.mxu0
        %v802 = vadd.f32 %v267, %v801
        %803 = vmatmul.bf16.gmra.mxu0 %v722
        %v804 = vpop.f32.mrf.mxu0
        %v805 = vadd.f32 %v267, %v804
        %v806 = vpop.f32.mrf.mxu0
        %v807 = vadd.f32 %v267, %v806
        %808 = vmatmul.bf16.gmra.mxu0 %v725
        %v809 = vpop.f32.mrf.mxu0
        %v810 = vadd.f32 %v267, %v809
        %v811 = vpop.f32.mrf.mxu0
        %v812 = vadd.f32 %v267, %v811
        %813 = vmatmul.bf16.gmra.mxu0 %v728
        %v814 = vpop.f32.mrf.mxu0
        %v815 = vadd.f32 %v267, %v814
        %v816 = vpop.f32.mrf.mxu0
        %v817 = vadd.f32 %v267, %v816
        %818 = vdwg.mxu0
        %v819 = vmax.f32 %v740, 0.0
        %v820 = vmax.f32 %v742, 0.0
        %v821 = vmax.f32 %v745, 0.0
        %v822 = vmax.f32 %v747, 0.0
        %v823 = vmax.f32 %v750, 0.0
        %v824 = vmax.f32 %v752, 0.0
        %v825 = vmax.f32 %v755, 0.0
        %v826 = vmax.f32 %v757, 0.0
        %v827 = vmax.f32 %v760, 0.0
        %v828 = vmax.f32 %v762, 0.0
        %v829 = vmax.f32 %v765, 0.0
        %v830 = vmax.f32 %v767, 0.0
        %v831 = vmax.f32 %v770, 0.0
        %v832 = vmax.f32 %v772, 0.0
        %v833 = vmax.f32 %v775, 0.0
        %v834 = vmax.f32 %v777, 0.0
        %v835 = vmax.f32 %v780, 0.0
        %v836 = vmax.f32 %v782, 0.0
        %v837 = vmax.f32 %v785, 0.0
        %v838 = vmax.f32 %v787, 0.0
        %v839 = vmax.f32 %v790, 0.0
        %v840 = vmax.f32 %v792, 0.0
        %v841 = vmax.f32 %v795, 0.0
        %v842 = vmax.f32 %v797, 0.0
        %v843 = vmax.f32 %v800, 0.0
        %v844 = vmax.f32 %v802, 0.0
        %v845 = vmax.f32 %v805, 0.0
        %v846 = vmax.f32 %v807, 0.0
        %v847 = vmax.f32 %v810, 0.0
        %v848 = vmax.f32 %v812, 0.0
        %v849 = vmax.f32 %v815, 0.0
        %v850 = vmax.f32 %v817, 0.0
        %v851 = vadd.f32 %v819, %v820
        %v852 = vadd.f32 %v851, %v821
        %v853 = vadd.f32 %v852, %v822
        %v854 = vadd.f32 %v853, %v823
        %v855 = vadd.f32 %v854, %v824
        %v856 = vadd.f32 %v855, %v825
        %v857 = vadd.f32 %v856, %v826
        %v858 = vadd.f32 %v857, %v827
        %v859 = vadd.f32 %v858, %v828
        %v860 = vadd.f32 %v859, %v829
        %v861 = vadd.f32 %v860, %v830
        %v862 = vadd.f32 %v861, %v831
        %v863 = vadd.f32 %v862, %v832
        %v864 = vadd.f32 %v863, %v833
        %v865 = vadd.f32 %v864, %v834
        %v866 = vadd.f32 %v865, %v835
        %v867 = vadd.f32 %v866, %v836
        %v868 = vadd.f32 %v867, %v837
        %v869 = vadd.f32 %v868, %v838
        %v870 = vadd.f32 %v869, %v839
        %v871 = vadd.f32 %v870, %v840
        %v872 = vadd.f32 %v871, %v841
        %v873 = vadd.f32 %v872, %v842
        %v874 = vadd.f32 %v873, %v843
        %v875 = vadd.f32 %v874, %v844
        %v876 = vadd.f32 %v875, %v845
        %v877 = vadd.f32 %v876, %v846
        %v878 = vadd.f32 %v877, %v847
        %v879 = vadd.f32 %v878, %v848
        %v880 = vadd.f32 %v879, %v849
        %v881 = vadd.f32 %v880, %v850
        %v882 = vrot.slane %v881, 4
        %v883 = vadd.f32 %v881, %v882
        %v884 = vrot.slane %v883, 2
        %v885 = vadd.f32 %v883, %v884
        %v886 = vrot.slane %v885, 1
        %v887 = vadd.f32 %v885, %v886
        %v888 = vmul.f32 %v887, 0.00390625
        %s889 = scalar_lea.vmem %s226, 256
        %v890 = vld [vmem:[%s889] sm:$0xf]
        %v891 = vld [vmem:[%s889 + $0x4] sm:$0xf]
        %v892 = vld [vmem:[%s889 + $0x8] sm:$0xf]
        %v893 = vld [vmem:[%s889 + $0xc] sm:$0xf]
        %v894 = vld [vmem:[%s889 + $0x10] sm:$0xf]
        %v895 = vld [vmem:[%s889 + $0x14] sm:$0xf]
        %v896 = vld [vmem:[%s889 + $0x18] sm:$0xf]
        %v897 = vld [vmem:[%s889 + $0x1c] sm:$0xf]
        %v898 = vld [vmem:[%s889 + $0x20] sm:$0xf]
        %v899 = vld [vmem:[%s889 + $0x24] sm:$0xf]
        %v900 = vld [vmem:[%s889 + $0x28] sm:$0xf]
        %v901 = vld [vmem:[%s889 + $0x2c] sm:$0xf]
        %v902 = vld [vmem:[%s889 + $0x30] sm:$0xf]
        %v903 = vld [vmem:[%s889 + $0x34] sm:$0xf]
        %v904 = vld [vmem:[%s889 + $0x38] sm:$0xf]
        %v905 = vld [vmem:[%s889 + $0x3c] sm:$0xf]
        %v906 = vld [vmem:[%s889 + $0x40] sm:$0xf]
        %v907 = vld [vmem:[%s889 + $0x44] sm:$0xf]
        %v908 = vld [vmem:[%s889 + $0x48] sm:$0xf]
        %v909 = vld [vmem:[%s889 + $0x4c] sm:$0xf]
        %v910 = vld [vmem:[%s889 + $0x50] sm:$0xf]
        %v911 = vld [vmem:[%s889 + $0x54] sm:$0xf]
        %v912 = vld [vmem:[%s889 + $0x58] sm:$0xf]
        %v913 = vld [vmem:[%s889 + $0x5c] sm:$0xf]
        %v914 = vld [vmem:[%s889 + $0x60] sm:$0xf]
        %v915 = vld [vmem:[%s889 + $0x64] sm:$0xf]
        %v916 = vld [vmem:[%s889 + $0x68] sm:$0xf]
        %v917 = vld [vmem:[%s889 + $0x6c] sm:$0xf]
        %v918 = vld [vmem:[%s889 + $0x70] sm:$0xf]
        %v919 = vld [vmem:[%s889 + $0x74] sm:$0xf]
        %v920 = vld [vmem:[%s889 + $0x78] sm:$0xf]
        %v921 = vld [vmem:[%s889 + $0x7c] sm:$0xf]
        %v954 = vunpack.c.l.b16 %v890
        %v955 = vunpack.c.l.b16 %v891
        %v956 = vunpack.c.l.b16 %v892
        %v957 = vunpack.c.l.b16 %v893
        %v958 = vunpack.c.l.b16 %v894
        %v959 = vunpack.c.l.b16 %v895
        %v960 = vunpack.c.l.b16 %v896
        %v961 = vunpack.c.l.b16 %v897
        %v962 = vunpack.c.l.b16 %v898
        %v963 = vunpack.c.l.b16 %v899
        %v964 = vunpack.c.l.b16 %v900
        %v965 = vunpack.c.l.b16 %v901
        %v966 = vunpack.c.l.b16 %v902
        %v967 = vunpack.c.l.b16 %v903
        %v968 = vunpack.c.l.b16 %v904
        %v969 = vunpack.c.l.b16 %v905
        %v970 = vunpack.c.l.b16 %v906
        %v971 = vunpack.c.l.b16 %v907
        %v972 = vunpack.c.l.b16 %v908
        %v973 = vunpack.c.l.b16 %v909
        %v974 = vunpack.c.l.b16 %v910
        %v975 = vunpack.c.l.b16 %v911
        %v976 = vunpack.c.l.b16 %v912
        %v977 = vunpack.c.l.b16 %v913
        %v978 = vunpack.c.l.b16 %v914
        %v979 = vunpack.c.l.b16 %v915
        %v980 = vunpack.c.l.b16 %v916
        %v981 = vunpack.c.l.b16 %v917
        %v982 = vunpack.c.l.b16 %v918
        %v983 = vunpack.c.l.b16 %v919
        %v984 = vunpack.c.l.b16 %v920
        %v985 = vunpack.c.l.b16 %v921
        %v986 = vpack.c.b16 %v955, %v954
        %v987 = vpack.c.b16 %v957, %v956
        %v988 = vpack.c.b16 %v959, %v958
        %v989 = vpack.c.b16 %v961, %v960
        %v990 = vpack.c.b16 %v963, %v962
        %v991 = vpack.c.b16 %v965, %v964
        %v992 = vpack.c.b16 %v967, %v966
        %v993 = vpack.c.b16 %v969, %v968
        %v994 = vpack.c.b16 %v971, %v970
        %v995 = vpack.c.b16 %v973, %v972
        %v996 = vpack.c.b16 %v975, %v974
        %v997 = vpack.c.b16 %v977, %v976
        %v998 = vpack.c.b16 %v979, %v978
        %v999 = vpack.c.b16 %v981, %v980
        %v1000 = vpack.c.b16 %v983, %v982
        %v1001 = vpack.c.b16 %v985, %v984
        %v1003 = vsel %vm361, %v986, 0
        %v1006 = vsel %vm361, %v987, 0
        %v1009 = vsel %vm361, %v988, 0
        %v1012 = vsel %vm361, %v989, 0
        %v1015 = vsel %vm361, %v990, 0
        %v1018 = vsel %vm361, %v991, 0
        %v1021 = vsel %vm361, %v992, 0
        %v1024 = vsel %vm361, %v993, 0
        %v1027 = vsel %vm361, %v994, 0
        %v1030 = vsel %vm361, %v995, 0
        %v1033 = vsel %vm361, %v996, 0
        %v1036 = vsel %vm361, %v997, 0
        %v1039 = vsel %vm361, %v998, 0
        %v1042 = vsel %vm361, %v999, 0
        %v1045 = vsel %vm361, %v1000, 0
        %v1048 = vsel %vm361, %v1001, 0
        %1050 = vmatpush.bf16.msra.mxu0 0
        %1051 = vmatpush.bf16.msra.mxu0 0
        %1052 = vmatpush.bf16.msra.mxu0 0
        %1053 = vmatpush.bf16.msra.mxu0 0
        %1054 = vmatpush.bf16.msra.mxu0 0
        %1055 = vmatpush.bf16.msra.mxu0 0
        %1056 = vmatpush.bf16.msra.mxu0 %v358
        %1057 = vmatpush.bf16.msra.mxu0 %v357
        %1058 = vmatmul.bf16.gmra.mxu0 %v1003
        %v1059 = vpop.f32.mrf.mxu0
        %v1060 = vadd.f32 %v267, %v1059
        %v1061 = vpop.f32.mrf.mxu0
        %v1062 = vadd.f32 %v267, %v1061
        %1063 = vmatmul.bf16.gmra.mxu0 %v1006
        %v1064 = vpop.f32.mrf.mxu0
        %v1065 = vadd.f32 %v267, %v1064
        %v1066 = vpop.f32.mrf.mxu0
        %v1067 = vadd.f32 %v267, %v1066
        %1068 = vmatmul.bf16.gmra.mxu0 %v1009
        %v1069 = vpop.f32.mrf.mxu0
        %v1070 = vadd.f32 %v267, %v1069
        %v1071 = vpop.f32.mrf.mxu0
        %v1072 = vadd.f32 %v267, %v1071
        %1073 = vmatmul.bf16.gmra.mxu0 %v1012
        %v1074 = vpop.f32.mrf.mxu0
        %v1075 = vadd.f32 %v267, %v1074
        %v1076 = vpop.f32.mrf.mxu0
        %v1077 = vadd.f32 %v267, %v1076
        %1078 = vmatmul.bf16.gmra.mxu0 %v1015
        %v1079 = vpop.f32.mrf.mxu0
        %v1080 = vadd.f32 %v267, %v1079
        %v1081 = vpop.f32.mrf.mxu0
        %v1082 = vadd.f32 %v267, %v1081
        %1083 = vmatmul.bf16.gmra.mxu0 %v1018
        %v1084 = vpop.f32.mrf.mxu0
        %v1085 = vadd.f32 %v267, %v1084
        %v1086 = vpop.f32.mrf.mxu0
        %v1087 = vadd.f32 %v267, %v1086
        %1088 = vmatmul.bf16.gmra.mxu0 %v1021
        %v1089 = vpop.f32.mrf.mxu0
        %v1090 = vadd.f32 %v267, %v1089
        %v1091 = vpop.f32.mrf.mxu0
        %v1092 = vadd.f32 %v267, %v1091
        %1093 = vmatmul.bf16.gmra.mxu0 %v1024
        %v1094 = vpop.f32.mrf.mxu0
        %v1095 = vadd.f32 %v267, %v1094
        %v1096 = vpop.f32.mrf.mxu0
        %v1097 = vadd.f32 %v267, %v1096
        %1098 = vmatmul.bf16.gmra.mxu0 %v1027
        %v1099 = vpop.f32.mrf.mxu0
        %v1100 = vadd.f32 %v267, %v1099
        %v1101 = vpop.f32.mrf.mxu0
        %v1102 = vadd.f32 %v267, %v1101
        %1103 = vmatmul.bf16.gmra.mxu0 %v1030
        %v1104 = vpop.f32.mrf.mxu0
        %v1105 = vadd.f32 %v267, %v1104
        %v1106 = vpop.f32.mrf.mxu0
        %v1107 = vadd.f32 %v267, %v1106
        %1108 = vmatmul.bf16.gmra.mxu0 %v1033
        %v1109 = vpop.f32.mrf.mxu0
        %v1110 = vadd.f32 %v267, %v1109
        %v1111 = vpop.f32.mrf.mxu0
        %v1112 = vadd.f32 %v267, %v1111
        %1113 = vmatmul.bf16.gmra.mxu0 %v1036
        %v1114 = vpop.f32.mrf.mxu0
        %v1115 = vadd.f32 %v267, %v1114
        %v1116 = vpop.f32.mrf.mxu0
        %v1117 = vadd.f32 %v267, %v1116
        %1118 = vmatmul.bf16.gmra.mxu0 %v1039
        %v1119 = vpop.f32.mrf.mxu0
        %v1120 = vadd.f32 %v267, %v1119
        %v1121 = vpop.f32.mrf.mxu0
        %v1122 = vadd.f32 %v267, %v1121
        %1123 = vmatmul.bf16.gmra.mxu0 %v1042
        %v1124 = vpop.f32.mrf.mxu0
        %v1125 = vadd.f32 %v267, %v1124
        %v1126 = vpop.f32.mrf.mxu0
        %v1127 = vadd.f32 %v267, %v1126
        %1128 = vmatmul.bf16.gmra.mxu0 %v1045
        %v1129 = vpop.f32.mrf.mxu0
        %v1130 = vadd.f32 %v267, %v1129
        %v1131 = vpop.f32.mrf.mxu0
        %v1132 = vadd.f32 %v267, %v1131
        %1133 = vmatmul.bf16.gmra.mxu0 %v1048
        %v1134 = vpop.f32.mrf.mxu0
        %v1135 = vadd.f32 %v267, %v1134
        %v1136 = vpop.f32.mrf.mxu0
        %v1137 = vadd.f32 %v267, %v1136
        %1138 = vdwg.mxu0
        %v1139 = vmax.f32 %v1060, 0.0
        %v1140 = vmax.f32 %v1062, 0.0
        %v1141 = vmax.f32 %v1065, 0.0
        %v1142 = vmax.f32 %v1067, 0.0
        %v1143 = vmax.f32 %v1070, 0.0
        %v1144 = vmax.f32 %v1072, 0.0
        %v1145 = vmax.f32 %v1075, 0.0
        %v1146 = vmax.f32 %v1077, 0.0
        %v1147 = vmax.f32 %v1080, 0.0
        %v1148 = vmax.f32 %v1082, 0.0
        %v1149 = vmax.f32 %v1085, 0.0
        %v1150 = vmax.f32 %v1087, 0.0
        %v1151 = vmax.f32 %v1090, 0.0
        %v1152 = vmax.f32 %v1092, 0.0
        %v1153 = vmax.f32 %v1095, 0.0
        %v1154 = vmax.f32 %v1097, 0.0
        %v1155 = vmax.f32 %v1100, 0.0
        %v1156 = vmax.f32 %v1102, 0.0
        %v1157 = vmax.f32 %v1105, 0.0
        %v1158 = vmax.f32 %v1107, 0.0
        %v1159 = vmax.f32 %v1110, 0.0
        %v1160 = vmax.f32 %v1112, 0.0
        %v1161 = vmax.f32 %v1115, 0.0
        %v1162 = vmax.f32 %v1117, 0.0
        %v1163 = vmax.f32 %v1120, 0.0
        %v1164 = vmax.f32 %v1122, 0.0
        %v1165 = vmax.f32 %v1125, 0.0
        %v1166 = vmax.f32 %v1127, 0.0
        %v1167 = vmax.f32 %v1130, 0.0
        %v1168 = vmax.f32 %v1132, 0.0
        %v1169 = vmax.f32 %v1135, 0.0
        %v1170 = vmax.f32 %v1137, 0.0
        %v1171 = vadd.f32 %v1139, %v1140
        %v1172 = vadd.f32 %v1171, %v1141
        %v1173 = vadd.f32 %v1172, %v1142
        %v1174 = vadd.f32 %v1173, %v1143
        %v1175 = vadd.f32 %v1174, %v1144
        %v1176 = vadd.f32 %v1175, %v1145
        %v1177 = vadd.f32 %v1176, %v1146
        %v1178 = vadd.f32 %v1177, %v1147
        %v1179 = vadd.f32 %v1178, %v1148
        %v1180 = vadd.f32 %v1179, %v1149
        %v1181 = vadd.f32 %v1180, %v1150
        %v1182 = vadd.f32 %v1181, %v1151
        %v1183 = vadd.f32 %v1182, %v1152
        %v1184 = vadd.f32 %v1183, %v1153
        %v1185 = vadd.f32 %v1184, %v1154
        %v1186 = vadd.f32 %v1185, %v1155
        %v1187 = vadd.f32 %v1186, %v1156
        %v1188 = vadd.f32 %v1187, %v1157
        %v1189 = vadd.f32 %v1188, %v1158
        %v1190 = vadd.f32 %v1189, %v1159
        %v1191 = vadd.f32 %v1190, %v1160
        %v1192 = vadd.f32 %v1191, %v1161
        %v1193 = vadd.f32 %v1192, %v1162
        %v1194 = vadd.f32 %v1193, %v1163
        %v1195 = vadd.f32 %v1194, %v1164
        %v1196 = vadd.f32 %v1195, %v1165
        %v1197 = vadd.f32 %v1196, %v1166
        %v1198 = vadd.f32 %v1197, %v1167
        %v1199 = vadd.f32 %v1198, %v1168
        %v1200 = vadd.f32 %v1199, %v1169
        %v1201 = vadd.f32 %v1200, %v1170
        %v1202 = vrot.slane %v1201, 4
        %v1203 = vadd.f32 %v1201, %v1202
        %v1204 = vrot.slane %v1203, 2
        %v1205 = vadd.f32 %v1203, %v1204
        %v1206 = vrot.slane %v1205, 1
        %v1207 = vadd.f32 %v1205, %v1206
        %v1208 = vmul.f32 %v1207, 0.00390625
        %s1209 = scalar_lea.vmem %s226, 384
        %v1210 = vld [vmem:[%s1209] sm:$0xf]
        %v1211 = vld [vmem:[%s1209 + $0x4] sm:$0xf]
        %v1212 = vld [vmem:[%s1209 + $0x8] sm:$0xf]
        %v1213 = vld [vmem:[%s1209 + $0xc] sm:$0xf]
        %v1214 = vld [vmem:[%s1209 + $0x10] sm:$0xf]
        %v1215 = vld [vmem:[%s1209 + $0x14] sm:$0xf]
        %v1216 = vld [vmem:[%s1209 + $0x18] sm:$0xf]
        %v1217 = vld [vmem:[%s1209 + $0x1c] sm:$0xf]
        %v1218 = vld [vmem:[%s1209 + $0x20] sm:$0xf]
        %v1219 = vld [vmem:[%s1209 + $0x24] sm:$0xf]
        %v1220 = vld [vmem:[%s1209 + $0x28] sm:$0xf]
        %v1221 = vld [vmem:[%s1209 + $0x2c] sm:$0xf]
        %v1222 = vld [vmem:[%s1209 + $0x30] sm:$0xf]
        %v1223 = vld [vmem:[%s1209 + $0x34] sm:$0xf]
        %v1224 = vld [vmem:[%s1209 + $0x38] sm:$0xf]
        %v1225 = vld [vmem:[%s1209 + $0x3c] sm:$0xf]
        %v1226 = vld [vmem:[%s1209 + $0x40] sm:$0xf]
        %v1227 = vld [vmem:[%s1209 + $0x44] sm:$0xf]
        %v1228 = vld [vmem:[%s1209 + $0x48] sm:$0xf]
        %v1229 = vld [vmem:[%s1209 + $0x4c] sm:$0xf]
        %v1230 = vld [vmem:[%s1209 + $0x50] sm:$0xf]
        %v1231 = vld [vmem:[%s1209 + $0x54] sm:$0xf]
        %v1232 = vld [vmem:[%s1209 + $0x58] sm:$0xf]
        %v1233 = vld [vmem:[%s1209 + $0x5c] sm:$0xf]
        %v1234 = vld [vmem:[%s1209 + $0x60] sm:$0xf]
        %v1235 = vld [vmem:[%s1209 + $0x64] sm:$0xf]
        %v1236 = vld [vmem:[%s1209 + $0x68] sm:$0xf]
        %v1237 = vld [vmem:[%s1209 + $0x6c] sm:$0xf]
        %v1238 = vld [vmem:[%s1209 + $0x70] sm:$0xf]
        %v1239 = vld [vmem:[%s1209 + $0x74] sm:$0xf]
        %v1240 = vld [vmem:[%s1209 + $0x78] sm:$0xf]
        %v1241 = vld [vmem:[%s1209 + $0x7c] sm:$0xf]
        %v1274 = vunpack.c.l.b16 %v1210
        %v1275 = vunpack.c.l.b16 %v1211
        %v1276 = vunpack.c.l.b16 %v1212
        %v1277 = vunpack.c.l.b16 %v1213
        %v1278 = vunpack.c.l.b16 %v1214
        %v1279 = vunpack.c.l.b16 %v1215
        %v1280 = vunpack.c.l.b16 %v1216
        %v1281 = vunpack.c.l.b16 %v1217
        %v1282 = vunpack.c.l.b16 %v1218
        %v1283 = vunpack.c.l.b16 %v1219
        %v1284 = vunpack.c.l.b16 %v1220
        %v1285 = vunpack.c.l.b16 %v1221
        %v1286 = vunpack.c.l.b16 %v1222
        %v1287 = vunpack.c.l.b16 %v1223
        %v1288 = vunpack.c.l.b16 %v1224
        %v1289 = vunpack.c.l.b16 %v1225
        %v1290 = vunpack.c.l.b16 %v1226
        %v1291 = vunpack.c.l.b16 %v1227
        %v1292 = vunpack.c.l.b16 %v1228
        %v1293 = vunpack.c.l.b16 %v1229
        %v1294 = vunpack.c.l.b16 %v1230
        %v1295 = vunpack.c.l.b16 %v1231
        %v1296 = vunpack.c.l.b16 %v1232
        %v1297 = vunpack.c.l.b16 %v1233
        %v1298 = vunpack.c.l.b16 %v1234
        %v1299 = vunpack.c.l.b16 %v1235
        %v1300 = vunpack.c.l.b16 %v1236
        %v1301 = vunpack.c.l.b16 %v1237
        %v1302 = vunpack.c.l.b16 %v1238
        %v1303 = vunpack.c.l.b16 %v1239
        %v1304 = vunpack.c.l.b16 %v1240
        %v1305 = vunpack.c.l.b16 %v1241
        %v1306 = vpack.c.b16 %v1275, %v1274
        %v1307 = vpack.c.b16 %v1277, %v1276
        %v1308 = vpack.c.b16 %v1279, %v1278
        %v1309 = vpack.c.b16 %v1281, %v1280
        %v1310 = vpack.c.b16 %v1283, %v1282
        %v1311 = vpack.c.b16 %v1285, %v1284
        %v1312 = vpack.c.b16 %v1287, %v1286
        %v1313 = vpack.c.b16 %v1289, %v1288
        %v1314 = vpack.c.b16 %v1291, %v1290
        %v1315 = vpack.c.b16 %v1293, %v1292
        %v1316 = vpack.c.b16 %v1295, %v1294
        %v1317 = vpack.c.b16 %v1297, %v1296
        %v1318 = vpack.c.b16 %v1299, %v1298
        %v1319 = vpack.c.b16 %v1301, %v1300
        %v1320 = vpack.c.b16 %v1303, %v1302
        %v1321 = vpack.c.b16 %v1305, %v1304
        %v1323 = vsel %vm361, %v1306, 0
        %v1326 = vsel %vm361, %v1307, 0
        %v1329 = vsel %vm361, %v1308, 0
        %v1332 = vsel %vm361, %v1309, 0
        %v1335 = vsel %vm361, %v1310, 0
        %v1338 = vsel %vm361, %v1311, 0
        %v1341 = vsel %vm361, %v1312, 0
        %v1344 = vsel %vm361, %v1313, 0
        %v1347 = vsel %vm361, %v1314, 0
        %v1350 = vsel %vm361, %v1315, 0
        %v1353 = vsel %vm361, %v1316, 0
        %v1356 = vsel %vm361, %v1317, 0
        %v1359 = vsel %vm361, %v1318, 0
        %v1362 = vsel %vm361, %v1319, 0
        %v1365 = vsel %vm361, %v1320, 0
        %v1368 = vsel %vm361, %v1321, 0
        %1370 = vmatpush.bf16.msra.mxu0 0
        %1371 = vmatpush.bf16.msra.mxu0 0
        %1372 = vmatpush.bf16.msra.mxu0 0
        %1373 = vmatpush.bf16.msra.mxu0 0
        %1374 = vmatpush.bf16.msra.mxu0 0
        %1375 = vmatpush.bf16.msra.mxu0 0
        %1376 = vmatpush.bf16.msra.mxu0 %v358
        %1377 = vmatpush.bf16.msra.mxu0 %v357
        %1378 = vmatmul.bf16.gmra.mxu0 %v1323
        %v1379 = vpop.f32.mrf.mxu0
        %v1380 = vadd.f32 %v267, %v1379
        %v1381 = vpop.f32.mrf.mxu0
        %v1382 = vadd.f32 %v267, %v1381
        %1383 = vmatmul.bf16.gmra.mxu0 %v1326
        %v1384 = vpop.f32.mrf.mxu0
        %v1385 = vadd.f32 %v267, %v1384
        %v1386 = vpop.f32.mrf.mxu0
        %v1387 = vadd.f32 %v267, %v1386
        %1388 = vmatmul.bf16.gmra.mxu0 %v1329
        %v1389 = vpop.f32.mrf.mxu0
        %v1390 = vadd.f32 %v267, %v1389
        %v1391 = vpop.f32.mrf.mxu0
        %v1392 = vadd.f32 %v267, %v1391
        %1393 = vmatmul.bf16.gmra.mxu0 %v1332
        %v1394 = vpop.f32.mrf.mxu0
        %v1395 = vadd.f32 %v267, %v1394
        %v1396 = vpop.f32.mrf.mxu0
        %v1397 = vadd.f32 %v267, %v1396
        %1398 = vmatmul.bf16.gmra.mxu0 %v1335
        %v1399 = vpop.f32.mrf.mxu0
        %v1400 = vadd.f32 %v267, %v1399
        %v1401 = vpop.f32.mrf.mxu0
        %v1402 = vadd.f32 %v267, %v1401
        %1403 = vmatmul.bf16.gmra.mxu0 %v1338
        %v1404 = vpop.f32.mrf.mxu0
        %v1405 = vadd.f32 %v267, %v1404
        %v1406 = vpop.f32.mrf.mxu0
        %v1407 = vadd.f32 %v267, %v1406
        %1408 = vmatmul.bf16.gmra.mxu0 %v1341
        %v1409 = vpop.f32.mrf.mxu0
        %v1410 = vadd.f32 %v267, %v1409
        %v1411 = vpop.f32.mrf.mxu0
        %v1412 = vadd.f32 %v267, %v1411
        %1413 = vmatmul.bf16.gmra.mxu0 %v1344
        %v1414 = vpop.f32.mrf.mxu0
        %v1415 = vadd.f32 %v267, %v1414
        %v1416 = vpop.f32.mrf.mxu0
        %v1417 = vadd.f32 %v267, %v1416
        %1418 = vmatmul.bf16.gmra.mxu0 %v1347
        %v1419 = vpop.f32.mrf.mxu0
        %v1420 = vadd.f32 %v267, %v1419
        %v1421 = vpop.f32.mrf.mxu0
        %v1422 = vadd.f32 %v267, %v1421
        %1423 = vmatmul.bf16.gmra.mxu0 %v1350
        %v1424 = vpop.f32.mrf.mxu0
        %v1425 = vadd.f32 %v267, %v1424
        %v1426 = vpop.f32.mrf.mxu0
        %v1427 = vadd.f32 %v267, %v1426
        %1428 = vmatmul.bf16.gmra.mxu0 %v1353
        %v1429 = vpop.f32.mrf.mxu0
        %v1430 = vadd.f32 %v267, %v1429
        %v1431 = vpop.f32.mrf.mxu0
        %v1432 = vadd.f32 %v267, %v1431
        %1433 = vmatmul.bf16.gmra.mxu0 %v1356
        %v1434 = vpop.f32.mrf.mxu0
        %v1435 = vadd.f32 %v267, %v1434
        %v1436 = vpop.f32.mrf.mxu0
        %v1437 = vadd.f32 %v267, %v1436
        %1438 = vmatmul.bf16.gmra.mxu0 %v1359
        %v1439 = vpop.f32.mrf.mxu0
        %v1440 = vadd.f32 %v267, %v1439
        %v1441 = vpop.f32.mrf.mxu0
        %v1442 = vadd.f32 %v267, %v1441
        %1443 = vmatmul.bf16.gmra.mxu0 %v1362
        %v1444 = vpop.f32.mrf.mxu0
        %v1445 = vadd.f32 %v267, %v1444
        %v1446 = vpop.f32.mrf.mxu0
        %v1447 = vadd.f32 %v267, %v1446
        %1448 = vmatmul.bf16.gmra.mxu0 %v1365
        %v1449 = vpop.f32.mrf.mxu0
        %v1450 = vadd.f32 %v267, %v1449
        %v1451 = vpop.f32.mrf.mxu0
        %v1452 = vadd.f32 %v267, %v1451
        %1453 = vmatmul.bf16.gmra.mxu0 %v1368
        %v1454 = vpop.f32.mrf.mxu0
        %v1455 = vadd.f32 %v267, %v1454
        %v1456 = vpop.f32.mrf.mxu0
        %v1457 = vadd.f32 %v267, %v1456
        %1458 = vdwg.mxu0
        %v1459 = vmax.f32 %v1380, 0.0
        %v1460 = vmax.f32 %v1382, 0.0
        %v1461 = vmax.f32 %v1385, 0.0
        %v1462 = vmax.f32 %v1387, 0.0
        %v1463 = vmax.f32 %v1390, 0.0
        %v1464 = vmax.f32 %v1392, 0.0
        %v1465 = vmax.f32 %v1395, 0.0
        %v1466 = vmax.f32 %v1397, 0.0
        %v1467 = vmax.f32 %v1400, 0.0
        %v1468 = vmax.f32 %v1402, 0.0
        %v1469 = vmax.f32 %v1405, 0.0
        %v1470 = vmax.f32 %v1407, 0.0
        %v1471 = vmax.f32 %v1410, 0.0
        %v1472 = vmax.f32 %v1412, 0.0
        %v1473 = vmax.f32 %v1415, 0.0
        %v1474 = vmax.f32 %v1417, 0.0
        %v1475 = vmax.f32 %v1420, 0.0
        %v1476 = vmax.f32 %v1422, 0.0
        %v1477 = vmax.f32 %v1425, 0.0
        %v1478 = vmax.f32 %v1427, 0.0
        %v1479 = vmax.f32 %v1430, 0.0
        %v1480 = vmax.f32 %v1432, 0.0
        %v1481 = vmax.f32 %v1435, 0.0
        %v1482 = vmax.f32 %v1437, 0.0
        %v1483 = vmax.f32 %v1440, 0.0
        %v1484 = vmax.f32 %v1442, 0.0
        %v1485 = vmax.f32 %v1445, 0.0
        %v1486 = vmax.f32 %v1447, 0.0
        %v1487 = vmax.f32 %v1450, 0.0
        %v1488 = vmax.f32 %v1452, 0.0
        %v1489 = vmax.f32 %v1455, 0.0
        %v1490 = vmax.f32 %v1457, 0.0
        %v1491 = vadd.f32 %v1459, %v1460
        %v1492 = vadd.f32 %v1491, %v1461
        %v1493 = vadd.f32 %v1492, %v1462
        %v1494 = vadd.f32 %v1493, %v1463
        %v1495 = vadd.f32 %v1494, %v1464
        %v1496 = vadd.f32 %v1495, %v1465
        %v1497 = vadd.f32 %v1496, %v1466
        %v1498 = vadd.f32 %v1497, %v1467
        %v1499 = vadd.f32 %v1498, %v1468
        %v1500 = vadd.f32 %v1499, %v1469
        %v1501 = vadd.f32 %v1500, %v1470
        %v1502 = vadd.f32 %v1501, %v1471
        %v1503 = vadd.f32 %v1502, %v1472
        %v1504 = vadd.f32 %v1503, %v1473
        %v1505 = vadd.f32 %v1504, %v1474
        %v1506 = vadd.f32 %v1505, %v1475
        %v1507 = vadd.f32 %v1506, %v1476
        %v1508 = vadd.f32 %v1507, %v1477
        %v1509 = vadd.f32 %v1508, %v1478
        %v1510 = vadd.f32 %v1509, %v1479
        %v1511 = vadd.f32 %v1510, %v1480
        %v1512 = vadd.f32 %v1511, %v1481
        %v1513 = vadd.f32 %v1512, %v1482
        %v1514 = vadd.f32 %v1513, %v1483
        %v1515 = vadd.f32 %v1514, %v1484
        %v1516 = vadd.f32 %v1515, %v1485
        %v1517 = vadd.f32 %v1516, %v1486
        %v1518 = vadd.f32 %v1517, %v1487
        %v1519 = vadd.f32 %v1518, %v1488
        %v1520 = vadd.f32 %v1519, %v1489
        %v1521 = vadd.f32 %v1520, %v1490
        %v1522 = vrot.slane %v1521, 4
        %v1523 = vadd.f32 %v1521, %v1522
        %v1524 = vrot.slane %v1523, 2
        %v1525 = vadd.f32 %v1523, %v1524
        %v1526 = vrot.slane %v1525, 1
        %v1527 = vadd.f32 %v1525, %v1526
        %v1528 = vmul.f32 %v1527, 0.00390625
        %s1529 = scalar_lea.vmem %s226, 512
        %v1530 = vld [vmem:[%s1529] sm:$0xf]
        %v1531 = vld [vmem:[%s1529 + $0x4] sm:$0xf]
        %v1532 = vld [vmem:[%s1529 + $0x8] sm:$0xf]
        %v1533 = vld [vmem:[%s1529 + $0xc] sm:$0xf]
        %v1534 = vld [vmem:[%s1529 + $0x10] sm:$0xf]
        %v1535 = vld [vmem:[%s1529 + $0x14] sm:$0xf]
        %v1536 = vld [vmem:[%s1529 + $0x18] sm:$0xf]
        %v1537 = vld [vmem:[%s1529 + $0x1c] sm:$0xf]
        %v1538 = vld [vmem:[%s1529 + $0x20] sm:$0xf]
        %v1539 = vld [vmem:[%s1529 + $0x24] sm:$0xf]
        %v1540 = vld [vmem:[%s1529 + $0x28] sm:$0xf]
        %v1541 = vld [vmem:[%s1529 + $0x2c] sm:$0xf]
        %v1542 = vld [vmem:[%s1529 + $0x30] sm:$0xf]
        %v1543 = vld [vmem:[%s1529 + $0x34] sm:$0xf]
        %v1544 = vld [vmem:[%s1529 + $0x38] sm:$0xf]
        %v1545 = vld [vmem:[%s1529 + $0x3c] sm:$0xf]
        %v1546 = vld [vmem:[%s1529 + $0x40] sm:$0xf]
        %v1547 = vld [vmem:[%s1529 + $0x44] sm:$0xf]
        %v1548 = vld [vmem:[%s1529 + $0x48] sm:$0xf]
        %v1549 = vld [vmem:[%s1529 + $0x4c] sm:$0xf]
        %v1550 = vld [vmem:[%s1529 + $0x50] sm:$0xf]
        %v1551 = vld [vmem:[%s1529 + $0x54] sm:$0xf]
        %v1552 = vld [vmem:[%s1529 + $0x58] sm:$0xf]
        %v1553 = vld [vmem:[%s1529 + $0x5c] sm:$0xf]
        %v1554 = vld [vmem:[%s1529 + $0x60] sm:$0xf]
        %v1555 = vld [vmem:[%s1529 + $0x64] sm:$0xf]
        %v1556 = vld [vmem:[%s1529 + $0x68] sm:$0xf]
        %v1557 = vld [vmem:[%s1529 + $0x6c] sm:$0xf]
        %v1558 = vld [vmem:[%s1529 + $0x70] sm:$0xf]
        %v1559 = vld [vmem:[%s1529 + $0x74] sm:$0xf]
        %v1560 = vld [vmem:[%s1529 + $0x78] sm:$0xf]
        %v1561 = vld [vmem:[%s1529 + $0x7c] sm:$0xf]
        %v1594 = vunpack.c.l.b16 %v1530
        %v1595 = vunpack.c.l.b16 %v1531
        %v1596 = vunpack.c.l.b16 %v1532
        %v1597 = vunpack.c.l.b16 %v1533
        %v1598 = vunpack.c.l.b16 %v1534
        %v1599 = vunpack.c.l.b16 %v1535
        %v1600 = vunpack.c.l.b16 %v1536
        %v1601 = vunpack.c.l.b16 %v1537
        %v1602 = vunpack.c.l.b16 %v1538
        %v1603 = vunpack.c.l.b16 %v1539
        %v1604 = vunpack.c.l.b16 %v1540
        %v1605 = vunpack.c.l.b16 %v1541
        %v1606 = vunpack.c.l.b16 %v1542
        %v1607 = vunpack.c.l.b16 %v1543
        %v1608 = vunpack.c.l.b16 %v1544
        %v1609 = vunpack.c.l.b16 %v1545
        %v1610 = vunpack.c.l.b16 %v1546
        %v1611 = vunpack.c.l.b16 %v1547
        %v1612 = vunpack.c.l.b16 %v1548
        %v1613 = vunpack.c.l.b16 %v1549
        %v1614 = vunpack.c.l.b16 %v1550
        %v1615 = vunpack.c.l.b16 %v1551
        %v1616 = vunpack.c.l.b16 %v1552
        %v1617 = vunpack.c.l.b16 %v1553
        %v1618 = vunpack.c.l.b16 %v1554
        %v1619 = vunpack.c.l.b16 %v1555
        %v1620 = vunpack.c.l.b16 %v1556
        %v1621 = vunpack.c.l.b16 %v1557
        %v1622 = vunpack.c.l.b16 %v1558
        %v1623 = vunpack.c.l.b16 %v1559
        %v1624 = vunpack.c.l.b16 %v1560
        %v1625 = vunpack.c.l.b16 %v1561
        %v1626 = vpack.c.b16 %v1595, %v1594
        %v1627 = vpack.c.b16 %v1597, %v1596
        %v1628 = vpack.c.b16 %v1599, %v1598
        %v1629 = vpack.c.b16 %v1601, %v1600
        %v1630 = vpack.c.b16 %v1603, %v1602
        %v1631 = vpack.c.b16 %v1605, %v1604
        %v1632 = vpack.c.b16 %v1607, %v1606
        %v1633 = vpack.c.b16 %v1609, %v1608
        %v1634 = vpack.c.b16 %v1611, %v1610
        %v1635 = vpack.c.b16 %v1613, %v1612
        %v1636 = vpack.c.b16 %v1615, %v1614
        %v1637 = vpack.c.b16 %v1617, %v1616
        %v1638 = vpack.c.b16 %v1619, %v1618
        %v1639 = vpack.c.b16 %v1621, %v1620
        %v1640 = vpack.c.b16 %v1623, %v1622
        %v1641 = vpack.c.b16 %v1625, %v1624
        %v1643 = vsel %vm361, %v1626, 0
        %v1646 = vsel %vm361, %v1627, 0
        %v1649 = vsel %vm361, %v1628, 0
        %v1652 = vsel %vm361, %v1629, 0
        %v1655 = vsel %vm361, %v1630, 0
        %v1658 = vsel %vm361, %v1631, 0
        %v1661 = vsel %vm361, %v1632, 0
        %v1664 = vsel %vm361, %v1633, 0
        %v1667 = vsel %vm361, %v1634, 0
        %v1670 = vsel %vm361, %v1635, 0
        %v1673 = vsel %vm361, %v1636, 0
        %v1676 = vsel %vm361, %v1637, 0
        %v1679 = vsel %vm361, %v1638, 0
        %v1682 = vsel %vm361, %v1639, 0
        %v1685 = vsel %vm361, %v1640, 0
        %v1688 = vsel %vm361, %v1641, 0
        %1690 = vmatpush.bf16.msra.mxu0 0
        %1691 = vmatpush.bf16.msra.mxu0 0
        %1692 = vmatpush.bf16.msra.mxu0 0
        %1693 = vmatpush.bf16.msra.mxu0 0
        %1694 = vmatpush.bf16.msra.mxu0 0
        %1695 = vmatpush.bf16.msra.mxu0 0
        %1696 = vmatpush.bf16.msra.mxu0 %v358
        %1697 = vmatpush.bf16.msra.mxu0 %v357
        %1698 = vmatmul.bf16.gmra.mxu0 %v1643
        %v1699 = vpop.f32.mrf.mxu0
        %v1700 = vadd.f32 %v267, %v1699
        %v1701 = vpop.f32.mrf.mxu0
        %v1702 = vadd.f32 %v267, %v1701
        %1703 = vmatmul.bf16.gmra.mxu0 %v1646
        %v1704 = vpop.f32.mrf.mxu0
        %v1705 = vadd.f32 %v267, %v1704
        %v1706 = vpop.f32.mrf.mxu0
        %v1707 = vadd.f32 %v267, %v1706
        %1708 = vmatmul.bf16.gmra.mxu0 %v1649
        %v1709 = vpop.f32.mrf.mxu0
        %v1710 = vadd.f32 %v267, %v1709
        %v1711 = vpop.f32.mrf.mxu0
        %v1712 = vadd.f32 %v267, %v1711
        %1713 = vmatmul.bf16.gmra.mxu0 %v1652
        %v1714 = vpop.f32.mrf.mxu0
        %v1715 = vadd.f32 %v267, %v1714
        %v1716 = vpop.f32.mrf.mxu0
        %v1717 = vadd.f32 %v267, %v1716
        %1718 = vmatmul.bf16.gmra.mxu0 %v1655
        %v1719 = vpop.f32.mrf.mxu0
        %v1720 = vadd.f32 %v267, %v1719
        %v1721 = vpop.f32.mrf.mxu0
        %v1722 = vadd.f32 %v267, %v1721
        %1723 = vmatmul.bf16.gmra.mxu0 %v1658
        %v1724 = vpop.f32.mrf.mxu0
        %v1725 = vadd.f32 %v267, %v1724
        %v1726 = vpop.f32.mrf.mxu0
        %v1727 = vadd.f32 %v267, %v1726
        %1728 = vmatmul.bf16.gmra.mxu0 %v1661
        %v1729 = vpop.f32.mrf.mxu0
        %v1730 = vadd.f32 %v267, %v1729
        %v1731 = vpop.f32.mrf.mxu0
        %v1732 = vadd.f32 %v267, %v1731
        %1733 = vmatmul.bf16.gmra.mxu0 %v1664
        %v1734 = vpop.f32.mrf.mxu0
        %v1735 = vadd.f32 %v267, %v1734
        %v1736 = vpop.f32.mrf.mxu0
        %v1737 = vadd.f32 %v267, %v1736
        %1738 = vmatmul.bf16.gmra.mxu0 %v1667
        %v1739 = vpop.f32.mrf.mxu0
        %v1740 = vadd.f32 %v267, %v1739
        %v1741 = vpop.f32.mrf.mxu0
        %v1742 = vadd.f32 %v267, %v1741
        %1743 = vmatmul.bf16.gmra.mxu0 %v1670
        %v1744 = vpop.f32.mrf.mxu0
        %v1745 = vadd.f32 %v267, %v1744
        %v1746 = vpop.f32.mrf.mxu0
        %v1747 = vadd.f32 %v267, %v1746
        %1748 = vmatmul.bf16.gmra.mxu0 %v1673
        %v1749 = vpop.f32.mrf.mxu0
        %v1750 = vadd.f32 %v267, %v1749
        %v1751 = vpop.f32.mrf.mxu0
        %v1752 = vadd.f32 %v267, %v1751
        %1753 = vmatmul.bf16.gmra.mxu0 %v1676
        %v1754 = vpop.f32.mrf.mxu0
        %v1755 = vadd.f32 %v267, %v1754
        %v1756 = vpop.f32.mrf.mxu0
        %v1757 = vadd.f32 %v267, %v1756
        %1758 = vmatmul.bf16.gmra.mxu0 %v1679
        %v1759 = vpop.f32.mrf.mxu0
        %v1760 = vadd.f32 %v267, %v1759
        %v1761 = vpop.f32.mrf.mxu0
        %v1762 = vadd.f32 %v267, %v1761
        %1763 = vmatmul.bf16.gmra.mxu0 %v1682
        %v1764 = vpop.f32.mrf.mxu0
        %v1765 = vadd.f32 %v267, %v1764
        %v1766 = vpop.f32.mrf.mxu0
        %v1767 = vadd.f32 %v267, %v1766
        %1768 = vmatmul.bf16.gmra.mxu0 %v1685
        %v1769 = vpop.f32.mrf.mxu0
        %v1770 = vadd.f32 %v267, %v1769
        %v1771 = vpop.f32.mrf.mxu0
        %v1772 = vadd.f32 %v267, %v1771
        %1773 = vmatmul.bf16.gmra.mxu0 %v1688
        %v1774 = vpop.f32.mrf.mxu0
        %v1775 = vadd.f32 %v267, %v1774
        %v1776 = vpop.f32.mrf.mxu0
        %v1777 = vadd.f32 %v267, %v1776
        %1778 = vdwg.mxu0
        %v1779 = vmax.f32 %v1700, 0.0
        %v1780 = vmax.f32 %v1702, 0.0
        %v1781 = vmax.f32 %v1705, 0.0
        %v1782 = vmax.f32 %v1707, 0.0
        %v1783 = vmax.f32 %v1710, 0.0
        %v1784 = vmax.f32 %v1712, 0.0
        %v1785 = vmax.f32 %v1715, 0.0
        %v1786 = vmax.f32 %v1717, 0.0
        %v1787 = vmax.f32 %v1720, 0.0
        %v1788 = vmax.f32 %v1722, 0.0
        %v1789 = vmax.f32 %v1725, 0.0
        %v1790 = vmax.f32 %v1727, 0.0
        %v1791 = vmax.f32 %v1730, 0.0
        %v1792 = vmax.f32 %v1732, 0.0
        %v1793 = vmax.f32 %v1735, 0.0
        %v1794 = vmax.f32 %v1737, 0.0
        %v1795 = vmax.f32 %v1740, 0.0
        %v1796 = vmax.f32 %v1742, 0.0
        %v1797 = vmax.f32 %v1745, 0.0
        %v1798 = vmax.f32 %v1747, 0.0
        %v1799 = vmax.f32 %v1750, 0.0
        %v1800 = vmax.f32 %v1752, 0.0
        %v1801 = vmax.f32 %v1755, 0.0
        %v1802 = vmax.f32 %v1757, 0.0
        %v1803 = vmax.f32 %v1760, 0.0
        %v1804 = vmax.f32 %v1762, 0.0
        %v1805 = vmax.f32 %v1765, 0.0
        %v1806 = vmax.f32 %v1767, 0.0
        %v1807 = vmax.f32 %v1770, 0.0
        %v1808 = vmax.f32 %v1772, 0.0
        %v1809 = vmax.f32 %v1775, 0.0
        %v1810 = vmax.f32 %v1777, 0.0
        %v1811 = vadd.f32 %v1779, %v1780
        %v1812 = vadd.f32 %v1811, %v1781
        %v1813 = vadd.f32 %v1812, %v1782
        %v1814 = vadd.f32 %v1813, %v1783
        %v1815 = vadd.f32 %v1814, %v1784
        %v1816 = vadd.f32 %v1815, %v1785
        %v1817 = vadd.f32 %v1816, %v1786
        %v1818 = vadd.f32 %v1817, %v1787
        %v1819 = vadd.f32 %v1818, %v1788
        %v1820 = vadd.f32 %v1819, %v1789
        %v1821 = vadd.f32 %v1820, %v1790
        %v1822 = vadd.f32 %v1821, %v1791
        %v1823 = vadd.f32 %v1822, %v1792
        %v1824 = vadd.f32 %v1823, %v1793
        %v1825 = vadd.f32 %v1824, %v1794
        %v1826 = vadd.f32 %v1825, %v1795
        %v1827 = vadd.f32 %v1826, %v1796
        %v1828 = vadd.f32 %v1827, %v1797
        %v1829 = vadd.f32 %v1828, %v1798
        %v1830 = vadd.f32 %v1829, %v1799
        %v1831 = vadd.f32 %v1830, %v1800
        %v1832 = vadd.f32 %v1831, %v1801
        %v1833 = vadd.f32 %v1832, %v1802
        %v1834 = vadd.f32 %v1833, %v1803
        %v1835 = vadd.f32 %v1834, %v1804
        %v1836 = vadd.f32 %v1835, %v1805
        %v1837 = vadd.f32 %v1836, %v1806
        %v1838 = vadd.f32 %v1837, %v1807
        %v1839 = vadd.f32 %v1838, %v1808
        %v1840 = vadd.f32 %v1839, %v1809
        %v1841 = vadd.f32 %v1840, %v1810
        %v1842 = vrot.slane %v1841, 4
        %v1843 = vadd.f32 %v1841, %v1842
        %v1844 = vrot.slane %v1843, 2
        %v1845 = vadd.f32 %v1843, %v1844
        %v1846 = vrot.slane %v1845, 1
        %v1847 = vadd.f32 %v1845, %v1846
        %v1848 = vmul.f32 %v1847, 0.00390625
        %s1849 = scalar_lea.vmem %s226, 640
        %v1850 = vld [vmem:[%s1849] sm:$0xf]
        %v1851 = vld [vmem:[%s1849 + $0x4] sm:$0xf]
        %v1852 = vld [vmem:[%s1849 + $0x8] sm:$0xf]
        %v1853 = vld [vmem:[%s1849 + $0xc] sm:$0xf]
        %v1854 = vld [vmem:[%s1849 + $0x10] sm:$0xf]
        %v1855 = vld [vmem:[%s1849 + $0x14] sm:$0xf]
        %v1856 = vld [vmem:[%s1849 + $0x18] sm:$0xf]
        %v1857 = vld [vmem:[%s1849 + $0x1c] sm:$0xf]
        %v1858 = vld [vmem:[%s1849 + $0x20] sm:$0xf]
        %v1859 = vld [vmem:[%s1849 + $0x24] sm:$0xf]
        %v1860 = vld [vmem:[%s1849 + $0x28] sm:$0xf]
        %v1861 = vld [vmem:[%s1849 + $0x2c] sm:$0xf]
        %v1862 = vld [vmem:[%s1849 + $0x30] sm:$0xf]
        %v1863 = vld [vmem:[%s1849 + $0x34] sm:$0xf]
        %v1864 = vld [vmem:[%s1849 + $0x38] sm:$0xf]
        %v1865 = vld [vmem:[%s1849 + $0x3c] sm:$0xf]
        %v1866 = vld [vmem:[%s1849 + $0x40] sm:$0xf]
        %v1867 = vld [vmem:[%s1849 + $0x44] sm:$0xf]
        %v1868 = vld [vmem:[%s1849 + $0x48] sm:$0xf]
        %v1869 = vld [vmem:[%s1849 + $0x4c] sm:$0xf]
        %v1870 = vld [vmem:[%s1849 + $0x50] sm:$0xf]
        %v1871 = vld [vmem:[%s1849 + $0x54] sm:$0xf]
        %v1872 = vld [vmem:[%s1849 + $0x58] sm:$0xf]
        %v1873 = vld [vmem:[%s1849 + $0x5c] sm:$0xf]
        %v1874 = vld [vmem:[%s1849 + $0x60] sm:$0xf]
        %v1875 = vld [vmem:[%s1849 + $0x64] sm:$0xf]
        %v1876 = vld [vmem:[%s1849 + $0x68] sm:$0xf]
        %v1877 = vld [vmem:[%s1849 + $0x6c] sm:$0xf]
        %v1878 = vld [vmem:[%s1849 + $0x70] sm:$0xf]
        %v1879 = vld [vmem:[%s1849 + $0x74] sm:$0xf]
        %v1880 = vld [vmem:[%s1849 + $0x78] sm:$0xf]
        %v1881 = vld [vmem:[%s1849 + $0x7c] sm:$0xf]
        %v1914 = vunpack.c.l.b16 %v1850
        %v1915 = vunpack.c.l.b16 %v1851
        %v1916 = vunpack.c.l.b16 %v1852
        %v1917 = vunpack.c.l.b16 %v1853
        %v1918 = vunpack.c.l.b16 %v1854
        %v1919 = vunpack.c.l.b16 %v1855
        %v1920 = vunpack.c.l.b16 %v1856
        %v1921 = vunpack.c.l.b16 %v1857
        %v1922 = vunpack.c.l.b16 %v1858
        %v1923 = vunpack.c.l.b16 %v1859
        %v1924 = vunpack.c.l.b16 %v1860
        %v1925 = vunpack.c.l.b16 %v1861
        %v1926 = vunpack.c.l.b16 %v1862
        %v1927 = vunpack.c.l.b16 %v1863
        %v1928 = vunpack.c.l.b16 %v1864
        %v1929 = vunpack.c.l.b16 %v1865
        %v1930 = vunpack.c.l.b16 %v1866
        %v1931 = vunpack.c.l.b16 %v1867
        %v1932 = vunpack.c.l.b16 %v1868
        %v1933 = vunpack.c.l.b16 %v1869
        %v1934 = vunpack.c.l.b16 %v1870
        %v1935 = vunpack.c.l.b16 %v1871
        %v1936 = vunpack.c.l.b16 %v1872
        %v1937 = vunpack.c.l.b16 %v1873
        %v1938 = vunpack.c.l.b16 %v1874
        %v1939 = vunpack.c.l.b16 %v1875
        %v1940 = vunpack.c.l.b16 %v1876
        %v1941 = vunpack.c.l.b16 %v1877
        %v1942 = vunpack.c.l.b16 %v1878
        %v1943 = vunpack.c.l.b16 %v1879
        %v1944 = vunpack.c.l.b16 %v1880
        %v1945 = vunpack.c.l.b16 %v1881
        %v1946 = vpack.c.b16 %v1915, %v1914
        %v1947 = vpack.c.b16 %v1917, %v1916
        %v1948 = vpack.c.b16 %v1919, %v1918
        %v1949 = vpack.c.b16 %v1921, %v1920
        %v1950 = vpack.c.b16 %v1923, %v1922
        %v1951 = vpack.c.b16 %v1925, %v1924
        %v1952 = vpack.c.b16 %v1927, %v1926
        %v1953 = vpack.c.b16 %v1929, %v1928
        %v1954 = vpack.c.b16 %v1931, %v1930
        %v1955 = vpack.c.b16 %v1933, %v1932
        %v1956 = vpack.c.b16 %v1935, %v1934
        %v1957 = vpack.c.b16 %v1937, %v1936
        %v1958 = vpack.c.b16 %v1939, %v1938
        %v1959 = vpack.c.b16 %v1941, %v1940
        %v1960 = vpack.c.b16 %v1943, %v1942
        %v1961 = vpack.c.b16 %v1945, %v1944
        %v1963 = vsel %vm361, %v1946, 0
        %v1966 = vsel %vm361, %v1947, 0
        %v1969 = vsel %vm361, %v1948, 0
        %v1972 = vsel %vm361, %v1949, 0
        %v1975 = vsel %vm361, %v1950, 0
        %v1978 = vsel %vm361, %v1951, 0
        %v1981 = vsel %vm361, %v1952, 0
        %v1984 = vsel %vm361, %v1953, 0
        %v1987 = vsel %vm361, %v1954, 0
        %v1990 = vsel %vm361, %v1955, 0
        %v1993 = vsel %vm361, %v1956, 0
        %v1996 = vsel %vm361, %v1957, 0
        %v1999 = vsel %vm361, %v1958, 0
        %v2002 = vsel %vm361, %v1959, 0
        %v2005 = vsel %vm361, %v1960, 0
        %v2008 = vsel %vm361, %v1961, 0
        %2010 = vmatpush.bf16.msra.mxu0 0
        %2011 = vmatpush.bf16.msra.mxu0 0
        %2012 = vmatpush.bf16.msra.mxu0 0
        %2013 = vmatpush.bf16.msra.mxu0 0
        %2014 = vmatpush.bf16.msra.mxu0 0
        %2015 = vmatpush.bf16.msra.mxu0 0
        %2016 = vmatpush.bf16.msra.mxu0 %v358
        %2017 = vmatpush.bf16.msra.mxu0 %v357
        %2018 = vmatmul.bf16.gmra.mxu0 %v1963
        %v2019 = vpop.f32.mrf.mxu0
        %v2020 = vadd.f32 %v267, %v2019
        %v2021 = vpop.f32.mrf.mxu0
        %v2022 = vadd.f32 %v267, %v2021
        %2023 = vmatmul.bf16.gmra.mxu0 %v1966
        %v2024 = vpop.f32.mrf.mxu0
        %v2025 = vadd.f32 %v267, %v2024
        %v2026 = vpop.f32.mrf.mxu0
        %v2027 = vadd.f32 %v267, %v2026
        %2028 = vmatmul.bf16.gmra.mxu0 %v1969
        %v2029 = vpop.f32.mrf.mxu0
        %v2030 = vadd.f32 %v267, %v2029
        %v2031 = vpop.f32.mrf.mxu0
        %v2032 = vadd.f32 %v267, %v2031
        %2033 = vmatmul.bf16.gmra.mxu0 %v1972
        %v2034 = vpop.f32.mrf.mxu0
        %v2035 = vadd.f32 %v267, %v2034
        %v2036 = vpop.f32.mrf.mxu0
        %v2037 = vadd.f32 %v267, %v2036
        %2038 = vmatmul.bf16.gmra.mxu0 %v1975
        %v2039 = vpop.f32.mrf.mxu0
        %v2040 = vadd.f32 %v267, %v2039
        %v2041 = vpop.f32.mrf.mxu0
        %v2042 = vadd.f32 %v267, %v2041
        %2043 = vmatmul.bf16.gmra.mxu0 %v1978
        %v2044 = vpop.f32.mrf.mxu0
        %v2045 = vadd.f32 %v267, %v2044
        %v2046 = vpop.f32.mrf.mxu0
        %v2047 = vadd.f32 %v267, %v2046
        %2048 = vmatmul.bf16.gmra.mxu0 %v1981
        %v2049 = vpop.f32.mrf.mxu0
        %v2050 = vadd.f32 %v267, %v2049
        %v2051 = vpop.f32.mrf.mxu0
        %v2052 = vadd.f32 %v267, %v2051
        %2053 = vmatmul.bf16.gmra.mxu0 %v1984
        %v2054 = vpop.f32.mrf.mxu0
        %v2055 = vadd.f32 %v267, %v2054
        %v2056 = vpop.f32.mrf.mxu0
        %v2057 = vadd.f32 %v267, %v2056
        %2058 = vmatmul.bf16.gmra.mxu0 %v1987
        %v2059 = vpop.f32.mrf.mxu0
        %v2060 = vadd.f32 %v267, %v2059
        %v2061 = vpop.f32.mrf.mxu0
        %v2062 = vadd.f32 %v267, %v2061
        %2063 = vmatmul.bf16.gmra.mxu0 %v1990
        %v2064 = vpop.f32.mrf.mxu0
        %v2065 = vadd.f32 %v267, %v2064
        %v2066 = vpop.f32.mrf.mxu0
        %v2067 = vadd.f32 %v267, %v2066
        %2068 = vmatmul.bf16.gmra.mxu0 %v1993
        %v2069 = vpop.f32.mrf.mxu0
        %v2070 = vadd.f32 %v267, %v2069
        %v2071 = vpop.f32.mrf.mxu0
        %v2072 = vadd.f32 %v267, %v2071
        %2073 = vmatmul.bf16.gmra.mxu0 %v1996
        %v2074 = vpop.f32.mrf.mxu0
        %v2075 = vadd.f32 %v267, %v2074
        %v2076 = vpop.f32.mrf.mxu0
        %v2077 = vadd.f32 %v267, %v2076
        %2078 = vmatmul.bf16.gmra.mxu0 %v1999
        %v2079 = vpop.f32.mrf.mxu0
        %v2080 = vadd.f32 %v267, %v2079
        %v2081 = vpop.f32.mrf.mxu0
        %v2082 = vadd.f32 %v267, %v2081
        %2083 = vmatmul.bf16.gmra.mxu0 %v2002
        %v2084 = vpop.f32.mrf.mxu0
        %v2085 = vadd.f32 %v267, %v2084
        %v2086 = vpop.f32.mrf.mxu0
        %v2087 = vadd.f32 %v267, %v2086
        %2088 = vmatmul.bf16.gmra.mxu0 %v2005
        %v2089 = vpop.f32.mrf.mxu0
        %v2090 = vadd.f32 %v267, %v2089
        %v2091 = vpop.f32.mrf.mxu0
        %v2092 = vadd.f32 %v267, %v2091
        %2093 = vmatmul.bf16.gmra.mxu0 %v2008
        %v2094 = vpop.f32.mrf.mxu0
        %v2095 = vadd.f32 %v267, %v2094
        %v2096 = vpop.f32.mrf.mxu0
        %v2097 = vadd.f32 %v267, %v2096
        %2098 = vdwg.mxu0
        %v2099 = vmax.f32 %v2020, 0.0
        %v2100 = vmax.f32 %v2022, 0.0
        %v2101 = vmax.f32 %v2025, 0.0
        %v2102 = vmax.f32 %v2027, 0.0
        %v2103 = vmax.f32 %v2030, 0.0
        %v2104 = vmax.f32 %v2032, 0.0
        %v2105 = vmax.f32 %v2035, 0.0
        %v2106 = vmax.f32 %v2037, 0.0
        %v2107 = vmax.f32 %v2040, 0.0
        %v2108 = vmax.f32 %v2042, 0.0
        %v2109 = vmax.f32 %v2045, 0.0
        %v2110 = vmax.f32 %v2047, 0.0
        %v2111 = vmax.f32 %v2050, 0.0
        %v2112 = vmax.f32 %v2052, 0.0
        %v2113 = vmax.f32 %v2055, 0.0
        %v2114 = vmax.f32 %v2057, 0.0
        %v2115 = vmax.f32 %v2060, 0.0
        %v2116 = vmax.f32 %v2062, 0.0
        %v2117 = vmax.f32 %v2065, 0.0
        %v2118 = vmax.f32 %v2067, 0.0
        %v2119 = vmax.f32 %v2070, 0.0
        %v2120 = vmax.f32 %v2072, 0.0
        %v2121 = vmax.f32 %v2075, 0.0
        %v2122 = vmax.f32 %v2077, 0.0
        %v2123 = vmax.f32 %v2080, 0.0
        %v2124 = vmax.f32 %v2082, 0.0
        %v2125 = vmax.f32 %v2085, 0.0
        %v2126 = vmax.f32 %v2087, 0.0
        %v2127 = vmax.f32 %v2090, 0.0
        %v2128 = vmax.f32 %v2092, 0.0
        %v2129 = vmax.f32 %v2095, 0.0
        %v2130 = vmax.f32 %v2097, 0.0
        %v2131 = vadd.f32 %v2099, %v2100
        %v2132 = vadd.f32 %v2131, %v2101
        %v2133 = vadd.f32 %v2132, %v2102
        %v2134 = vadd.f32 %v2133, %v2103
        %v2135 = vadd.f32 %v2134, %v2104
        %v2136 = vadd.f32 %v2135, %v2105
        %v2137 = vadd.f32 %v2136, %v2106
        %v2138 = vadd.f32 %v2137, %v2107
        %v2139 = vadd.f32 %v2138, %v2108
        %v2140 = vadd.f32 %v2139, %v2109
        %v2141 = vadd.f32 %v2140, %v2110
        %v2142 = vadd.f32 %v2141, %v2111
        %v2143 = vadd.f32 %v2142, %v2112
        %v2144 = vadd.f32 %v2143, %v2113
        %v2145 = vadd.f32 %v2144, %v2114
        %v2146 = vadd.f32 %v2145, %v2115
        %v2147 = vadd.f32 %v2146, %v2116
        %v2148 = vadd.f32 %v2147, %v2117
        %v2149 = vadd.f32 %v2148, %v2118
        %v2150 = vadd.f32 %v2149, %v2119
        %v2151 = vadd.f32 %v2150, %v2120
        %v2152 = vadd.f32 %v2151, %v2121
        %v2153 = vadd.f32 %v2152, %v2122
        %v2154 = vadd.f32 %v2153, %v2123
        %v2155 = vadd.f32 %v2154, %v2124
        %v2156 = vadd.f32 %v2155, %v2125
        %v2157 = vadd.f32 %v2156, %v2126
        %v2158 = vadd.f32 %v2157, %v2127
        %v2159 = vadd.f32 %v2158, %v2128
        %v2160 = vadd.f32 %v2159, %v2129
        %v2161 = vadd.f32 %v2160, %v2130
        %v2162 = vrot.slane %v2161, 4
        %v2163 = vadd.f32 %v2161, %v2162
        %v2164 = vrot.slane %v2163, 2
        %v2165 = vadd.f32 %v2163, %v2164
        %v2166 = vrot.slane %v2165, 1
        %v2167 = vadd.f32 %v2165, %v2166
        %v2168 = vmul.f32 %v2167, 0.00390625
        %s2169 = scalar_lea.vmem %s226, 768
        %v2170 = vld [vmem:[%s2169] sm:$0xf]
        %v2171 = vld [vmem:[%s2169 + $0x4] sm:$0xf]
        %v2172 = vld [vmem:[%s2169 + $0x8] sm:$0xf]
        %v2173 = vld [vmem:[%s2169 + $0xc] sm:$0xf]
        %v2174 = vld [vmem:[%s2169 + $0x10] sm:$0xf]
        %v2175 = vld [vmem:[%s2169 + $0x14] sm:$0xf]
        %v2176 = vld [vmem:[%s2169 + $0x18] sm:$0xf]
        %v2177 = vld [vmem:[%s2169 + $0x1c] sm:$0xf]
        %v2178 = vld [vmem:[%s2169 + $0x20] sm:$0xf]
        %v2179 = vld [vmem:[%s2169 + $0x24] sm:$0xf]
        %v2180 = vld [vmem:[%s2169 + $0x28] sm:$0xf]
        %v2181 = vld [vmem:[%s2169 + $0x2c] sm:$0xf]
        %v2182 = vld [vmem:[%s2169 + $0x30] sm:$0xf]
        %v2183 = vld [vmem:[%s2169 + $0x34] sm:$0xf]
        %v2184 = vld [vmem:[%s2169 + $0x38] sm:$0xf]
        %v2185 = vld [vmem:[%s2169 + $0x3c] sm:$0xf]
        %v2186 = vld [vmem:[%s2169 + $0x40] sm:$0xf]
        %v2187 = vld [vmem:[%s2169 + $0x44] sm:$0xf]
        %v2188 = vld [vmem:[%s2169 + $0x48] sm:$0xf]
        %v2189 = vld [vmem:[%s2169 + $0x4c] sm:$0xf]
        %v2190 = vld [vmem:[%s2169 + $0x50] sm:$0xf]
        %v2191 = vld [vmem:[%s2169 + $0x54] sm:$0xf]
        %v2192 = vld [vmem:[%s2169 + $0x58] sm:$0xf]
        %v2193 = vld [vmem:[%s2169 + $0x5c] sm:$0xf]
        %v2194 = vld [vmem:[%s2169 + $0x60] sm:$0xf]
        %v2195 = vld [vmem:[%s2169 + $0x64] sm:$0xf]
        %v2196 = vld [vmem:[%s2169 + $0x68] sm:$0xf]
        %v2197 = vld [vmem:[%s2169 + $0x6c] sm:$0xf]
        %v2198 = vld [vmem:[%s2169 + $0x70] sm:$0xf]
        %v2199 = vld [vmem:[%s2169 + $0x74] sm:$0xf]
        %v2200 = vld [vmem:[%s2169 + $0x78] sm:$0xf]
        %v2201 = vld [vmem:[%s2169 + $0x7c] sm:$0xf]
        %v2234 = vunpack.c.l.b16 %v2170
        %v2235 = vunpack.c.l.b16 %v2171
        %v2236 = vunpack.c.l.b16 %v2172
        %v2237 = vunpack.c.l.b16 %v2173
        %v2238 = vunpack.c.l.b16 %v2174
        %v2239 = vunpack.c.l.b16 %v2175
        %v2240 = vunpack.c.l.b16 %v2176
        %v2241 = vunpack.c.l.b16 %v2177
        %v2242 = vunpack.c.l.b16 %v2178
        %v2243 = vunpack.c.l.b16 %v2179
        %v2244 = vunpack.c.l.b16 %v2180
        %v2245 = vunpack.c.l.b16 %v2181
        %v2246 = vunpack.c.l.b16 %v2182
        %v2247 = vunpack.c.l.b16 %v2183
        %v2248 = vunpack.c.l.b16 %v2184
        %v2249 = vunpack.c.l.b16 %v2185
        %v2250 = vunpack.c.l.b16 %v2186
        %v2251 = vunpack.c.l.b16 %v2187
        %v2252 = vunpack.c.l.b16 %v2188
        %v2253 = vunpack.c.l.b16 %v2189
        %v2254 = vunpack.c.l.b16 %v2190
        %v2255 = vunpack.c.l.b16 %v2191
        %v2256 = vunpack.c.l.b16 %v2192
        %v2257 = vunpack.c.l.b16 %v2193
        %v2258 = vunpack.c.l.b16 %v2194
        %v2259 = vunpack.c.l.b16 %v2195
        %v2260 = vunpack.c.l.b16 %v2196
        %v2261 = vunpack.c.l.b16 %v2197
        %v2262 = vunpack.c.l.b16 %v2198
        %v2263 = vunpack.c.l.b16 %v2199
        %v2264 = vunpack.c.l.b16 %v2200
        %v2265 = vunpack.c.l.b16 %v2201
        %v2266 = vpack.c.b16 %v2235, %v2234
        %v2267 = vpack.c.b16 %v2237, %v2236
        %v2268 = vpack.c.b16 %v2239, %v2238
        %v2269 = vpack.c.b16 %v2241, %v2240
        %v2270 = vpack.c.b16 %v2243, %v2242
        %v2271 = vpack.c.b16 %v2245, %v2244
        %v2272 = vpack.c.b16 %v2247, %v2246
        %v2273 = vpack.c.b16 %v2249, %v2248
        %v2274 = vpack.c.b16 %v2251, %v2250
        %v2275 = vpack.c.b16 %v2253, %v2252
        %v2276 = vpack.c.b16 %v2255, %v2254
        %v2277 = vpack.c.b16 %v2257, %v2256
        %v2278 = vpack.c.b16 %v2259, %v2258
        %v2279 = vpack.c.b16 %v2261, %v2260
        %v2280 = vpack.c.b16 %v2263, %v2262
        %v2281 = vpack.c.b16 %v2265, %v2264
        %v2283 = vsel %vm361, %v2266, 0
        %v2286 = vsel %vm361, %v2267, 0
        %v2289 = vsel %vm361, %v2268, 0
        %v2292 = vsel %vm361, %v2269, 0
        %v2295 = vsel %vm361, %v2270, 0
        %v2298 = vsel %vm361, %v2271, 0
        %v2301 = vsel %vm361, %v2272, 0
        %v2304 = vsel %vm361, %v2273, 0
        %v2307 = vsel %vm361, %v2274, 0
        %v2310 = vsel %vm361, %v2275, 0
        %v2313 = vsel %vm361, %v2276, 0
        %v2316 = vsel %vm361, %v2277, 0
        %v2319 = vsel %vm361, %v2278, 0
        %v2322 = vsel %vm361, %v2279, 0
        %v2325 = vsel %vm361, %v2280, 0
        %v2328 = vsel %vm361, %v2281, 0
        %2330 = vmatpush.bf16.msra.mxu0 0
        %2331 = vmatpush.bf16.msra.mxu0 0
        %2332 = vmatpush.bf16.msra.mxu0 0
        %2333 = vmatpush.bf16.msra.mxu0 0
        %2334 = vmatpush.bf16.msra.mxu0 0
        %2335 = vmatpush.bf16.msra.mxu0 0
        %2336 = vmatpush.bf16.msra.mxu0 %v358
        %2337 = vmatpush.bf16.msra.mxu0 %v357
        %2338 = vmatmul.bf16.gmra.mxu0 %v2283
        %v2339 = vpop.f32.mrf.mxu0
        %v2340 = vadd.f32 %v267, %v2339
        %v2341 = vpop.f32.mrf.mxu0
        %v2342 = vadd.f32 %v267, %v2341
        %2343 = vmatmul.bf16.gmra.mxu0 %v2286
        %v2344 = vpop.f32.mrf.mxu0
        %v2345 = vadd.f32 %v267, %v2344
        %v2346 = vpop.f32.mrf.mxu0
        %v2347 = vadd.f32 %v267, %v2346
        %2348 = vmatmul.bf16.gmra.mxu0 %v2289
        %v2349 = vpop.f32.mrf.mxu0
        %v2350 = vadd.f32 %v267, %v2349
        %v2351 = vpop.f32.mrf.mxu0
        %v2352 = vadd.f32 %v267, %v2351
        %2353 = vmatmul.bf16.gmra.mxu0 %v2292
        %v2354 = vpop.f32.mrf.mxu0
        %v2355 = vadd.f32 %v267, %v2354
        %v2356 = vpop.f32.mrf.mxu0
        %v2357 = vadd.f32 %v267, %v2356
        %2358 = vmatmul.bf16.gmra.mxu0 %v2295
        %v2359 = vpop.f32.mrf.mxu0
        %v2360 = vadd.f32 %v267, %v2359
        %v2361 = vpop.f32.mrf.mxu0
        %v2362 = vadd.f32 %v267, %v2361
        %2363 = vmatmul.bf16.gmra.mxu0 %v2298
        %v2364 = vpop.f32.mrf.mxu0
        %v2365 = vadd.f32 %v267, %v2364
        %v2366 = vpop.f32.mrf.mxu0
        %v2367 = vadd.f32 %v267, %v2366
        %2368 = vmatmul.bf16.gmra.mxu0 %v2301
        %v2369 = vpop.f32.mrf.mxu0
        %v2370 = vadd.f32 %v267, %v2369
        %v2371 = vpop.f32.mrf.mxu0
        %v2372 = vadd.f32 %v267, %v2371
        %2373 = vmatmul.bf16.gmra.mxu0 %v2304
        %v2374 = vpop.f32.mrf.mxu0
        %v2375 = vadd.f32 %v267, %v2374
        %v2376 = vpop.f32.mrf.mxu0
        %v2377 = vadd.f32 %v267, %v2376
        %2378 = vmatmul.bf16.gmra.mxu0 %v2307
        %v2379 = vpop.f32.mrf.mxu0
        %v2380 = vadd.f32 %v267, %v2379
        %v2381 = vpop.f32.mrf.mxu0
        %v2382 = vadd.f32 %v267, %v2381
        %2383 = vmatmul.bf16.gmra.mxu0 %v2310
        %v2384 = vpop.f32.mrf.mxu0
        %v2385 = vadd.f32 %v267, %v2384
        %v2386 = vpop.f32.mrf.mxu0
        %v2387 = vadd.f32 %v267, %v2386
        %2388 = vmatmul.bf16.gmra.mxu0 %v2313
        %v2389 = vpop.f32.mrf.mxu0
        %v2390 = vadd.f32 %v267, %v2389
        %v2391 = vpop.f32.mrf.mxu0
        %v2392 = vadd.f32 %v267, %v2391
        %2393 = vmatmul.bf16.gmra.mxu0 %v2316
        %v2394 = vpop.f32.mrf.mxu0
        %v2395 = vadd.f32 %v267, %v2394
        %v2396 = vpop.f32.mrf.mxu0
        %v2397 = vadd.f32 %v267, %v2396
        %2398 = vmatmul.bf16.gmra.mxu0 %v2319
        %v2399 = vpop.f32.mrf.mxu0
        %v2400 = vadd.f32 %v267, %v2399
        %v2401 = vpop.f32.mrf.mxu0
        %v2402 = vadd.f32 %v267, %v2401
        %2403 = vmatmul.bf16.gmra.mxu0 %v2322
        %v2404 = vpop.f32.mrf.mxu0
        %v2405 = vadd.f32 %v267, %v2404
        %v2406 = vpop.f32.mrf.mxu0
        %v2407 = vadd.f32 %v267, %v2406
        %2408 = vmatmul.bf16.gmra.mxu0 %v2325
        %v2409 = vpop.f32.mrf.mxu0
        %v2410 = vadd.f32 %v267, %v2409
        %v2411 = vpop.f32.mrf.mxu0
        %v2412 = vadd.f32 %v267, %v2411
        %2413 = vmatmul.bf16.gmra.mxu0 %v2328
        %v2414 = vpop.f32.mrf.mxu0
        %v2415 = vadd.f32 %v267, %v2414
        %v2416 = vpop.f32.mrf.mxu0
        %v2417 = vadd.f32 %v267, %v2416
        %2418 = vdwg.mxu0
        %v2419 = vmax.f32 %v2340, 0.0
        %v2420 = vmax.f32 %v2342, 0.0
        %v2421 = vmax.f32 %v2345, 0.0
        %v2422 = vmax.f32 %v2347, 0.0
        %v2423 = vmax.f32 %v2350, 0.0
        %v2424 = vmax.f32 %v2352, 0.0
        %v2425 = vmax.f32 %v2355, 0.0
        %v2426 = vmax.f32 %v2357, 0.0
        %v2427 = vmax.f32 %v2360, 0.0
        %v2428 = vmax.f32 %v2362, 0.0
        %v2429 = vmax.f32 %v2365, 0.0
        %v2430 = vmax.f32 %v2367, 0.0
        %v2431 = vmax.f32 %v2370, 0.0
        %v2432 = vmax.f32 %v2372, 0.0
        %v2433 = vmax.f32 %v2375, 0.0
        %v2434 = vmax.f32 %v2377, 0.0
        %v2435 = vmax.f32 %v2380, 0.0
        %v2436 = vmax.f32 %v2382, 0.0
        %v2437 = vmax.f32 %v2385, 0.0
        %v2438 = vmax.f32 %v2387, 0.0
        %v2439 = vmax.f32 %v2390, 0.0
        %v2440 = vmax.f32 %v2392, 0.0
        %v2441 = vmax.f32 %v2395, 0.0
        %v2442 = vmax.f32 %v2397, 0.0
        %v2443 = vmax.f32 %v2400, 0.0
        %v2444 = vmax.f32 %v2402, 0.0
        %v2445 = vmax.f32 %v2405, 0.0
        %v2446 = vmax.f32 %v2407, 0.0
        %v2447 = vmax.f32 %v2410, 0.0
        %v2448 = vmax.f32 %v2412, 0.0
        %v2449 = vmax.f32 %v2415, 0.0
        %v2450 = vmax.f32 %v2417, 0.0
        %v2451 = vadd.f32 %v2419, %v2420
        %v2452 = vadd.f32 %v2451, %v2421
        %v2453 = vadd.f32 %v2452, %v2422
        %v2454 = vadd.f32 %v2453, %v2423
        %v2455 = vadd.f32 %v2454, %v2424
        %v2456 = vadd.f32 %v2455, %v2425
        %v2457 = vadd.f32 %v2456, %v2426
        %v2458 = vadd.f32 %v2457, %v2427
        %v2459 = vadd.f32 %v2458, %v2428
        %v2460 = vadd.f32 %v2459, %v2429
        %v2461 = vadd.f32 %v2460, %v2430
        %v2462 = vadd.f32 %v2461, %v2431
        %v2463 = vadd.f32 %v2462, %v2432
        %v2464 = vadd.f32 %v2463, %v2433
        %v2465 = vadd.f32 %v2464, %v2434
        %v2466 = vadd.f32 %v2465, %v2435
        %v2467 = vadd.f32 %v2466, %v2436
        %v2468 = vadd.f32 %v2467, %v2437
        %v2469 = vadd.f32 %v2468, %v2438
        %v2470 = vadd.f32 %v2469, %v2439
        %v2471 = vadd.f32 %v2470, %v2440
        %v2472 = vadd.f32 %v2471, %v2441
        %v2473 = vadd.f32 %v2472, %v2442
        %v2474 = vadd.f32 %v2473, %v2443
        %v2475 = vadd.f32 %v2474, %v2444
        %v2476 = vadd.f32 %v2475, %v2445
        %v2477 = vadd.f32 %v2476, %v2446
        %v2478 = vadd.f32 %v2477, %v2447
        %v2479 = vadd.f32 %v2478, %v2448
        %v2480 = vadd.f32 %v2479, %v2449
        %v2481 = vadd.f32 %v2480, %v2450
        %v2482 = vrot.slane %v2481, 4
        %v2483 = vadd.f32 %v2481, %v2482
        %v2484 = vrot.slane %v2483, 2
        %v2485 = vadd.f32 %v2483, %v2484
        %v2486 = vrot.slane %v2485, 1
        %v2487 = vadd.f32 %v2485, %v2486
        %v2488 = vmul.f32 %v2487, 0.00390625
        %s2489 = scalar_lea.vmem %s226, 896
        %v2490 = vld [vmem:[%s2489] sm:$0xf]
        %v2491 = vld [vmem:[%s2489 + $0x4] sm:$0xf]
        %v2492 = vld [vmem:[%s2489 + $0x8] sm:$0xf]
        %v2493 = vld [vmem:[%s2489 + $0xc] sm:$0xf]
        %v2494 = vld [vmem:[%s2489 + $0x10] sm:$0xf]
        %v2495 = vld [vmem:[%s2489 + $0x14] sm:$0xf]
        %v2496 = vld [vmem:[%s2489 + $0x18] sm:$0xf]
        %v2497 = vld [vmem:[%s2489 + $0x1c] sm:$0xf]
        %v2498 = vld [vmem:[%s2489 + $0x20] sm:$0xf]
        %v2499 = vld [vmem:[%s2489 + $0x24] sm:$0xf]
        %v2500 = vld [vmem:[%s2489 + $0x28] sm:$0xf]
        %v2501 = vld [vmem:[%s2489 + $0x2c] sm:$0xf]
        %v2502 = vld [vmem:[%s2489 + $0x30] sm:$0xf]
        %v2503 = vld [vmem:[%s2489 + $0x34] sm:$0xf]
        %v2504 = vld [vmem:[%s2489 + $0x38] sm:$0xf]
        %v2505 = vld [vmem:[%s2489 + $0x3c] sm:$0xf]
        %v2506 = vld [vmem:[%s2489 + $0x40] sm:$0xf]
        %v2507 = vld [vmem:[%s2489 + $0x44] sm:$0xf]
        %v2508 = vld [vmem:[%s2489 + $0x48] sm:$0xf]
        %v2509 = vld [vmem:[%s2489 + $0x4c] sm:$0xf]
        %v2510 = vld [vmem:[%s2489 + $0x50] sm:$0xf]
        %v2511 = vld [vmem:[%s2489 + $0x54] sm:$0xf]
        %v2512 = vld [vmem:[%s2489 + $0x58] sm:$0xf]
        %v2513 = vld [vmem:[%s2489 + $0x5c] sm:$0xf]
        %v2514 = vld [vmem:[%s2489 + $0x60] sm:$0xf]
        %v2515 = vld [vmem:[%s2489 + $0x64] sm:$0xf]
        %v2516 = vld [vmem:[%s2489 + $0x68] sm:$0xf]
        %v2517 = vld [vmem:[%s2489 + $0x6c] sm:$0xf]
        %v2518 = vld [vmem:[%s2489 + $0x70] sm:$0xf]
        %v2519 = vld [vmem:[%s2489 + $0x74] sm:$0xf]
        %v2520 = vld [vmem:[%s2489 + $0x78] sm:$0xf]
        %v2521 = vld [vmem:[%s2489 + $0x7c] sm:$0xf]
        %v2554 = vunpack.c.l.b16 %v2490
        %v2555 = vunpack.c.l.b16 %v2491
        %v2556 = vunpack.c.l.b16 %v2492
        %v2557 = vunpack.c.l.b16 %v2493
        %v2558 = vunpack.c.l.b16 %v2494
        %v2559 = vunpack.c.l.b16 %v2495
        %v2560 = vunpack.c.l.b16 %v2496
        %v2561 = vunpack.c.l.b16 %v2497
        %v2562 = vunpack.c.l.b16 %v2498
        %v2563 = vunpack.c.l.b16 %v2499
        %v2564 = vunpack.c.l.b16 %v2500
        %v2565 = vunpack.c.l.b16 %v2501
        %v2566 = vunpack.c.l.b16 %v2502
        %v2567 = vunpack.c.l.b16 %v2503
        %v2568 = vunpack.c.l.b16 %v2504
        %v2569 = vunpack.c.l.b16 %v2505
        %v2570 = vunpack.c.l.b16 %v2506
        %v2571 = vunpack.c.l.b16 %v2507
        %v2572 = vunpack.c.l.b16 %v2508
        %v2573 = vunpack.c.l.b16 %v2509
        %v2574 = vunpack.c.l.b16 %v2510
        %v2575 = vunpack.c.l.b16 %v2511
        %v2576 = vunpack.c.l.b16 %v2512
        %v2577 = vunpack.c.l.b16 %v2513
        %v2578 = vunpack.c.l.b16 %v2514
        %v2579 = vunpack.c.l.b16 %v2515
        %v2580 = vunpack.c.l.b16 %v2516
        %v2581 = vunpack.c.l.b16 %v2517
        %v2582 = vunpack.c.l.b16 %v2518
        %v2583 = vunpack.c.l.b16 %v2519
        %v2584 = vunpack.c.l.b16 %v2520
        %v2585 = vunpack.c.l.b16 %v2521
        %v2586 = vpack.c.b16 %v2555, %v2554
        %v2587 = vpack.c.b16 %v2557, %v2556
        %v2588 = vpack.c.b16 %v2559, %v2558
        %v2589 = vpack.c.b16 %v2561, %v2560
        %v2590 = vpack.c.b16 %v2563, %v2562
        %v2591 = vpack.c.b16 %v2565, %v2564
        %v2592 = vpack.c.b16 %v2567, %v2566
        %v2593 = vpack.c.b16 %v2569, %v2568
        %v2594 = vpack.c.b16 %v2571, %v2570
        %v2595 = vpack.c.b16 %v2573, %v2572
        %v2596 = vpack.c.b16 %v2575, %v2574
        %v2597 = vpack.c.b16 %v2577, %v2576
        %v2598 = vpack.c.b16 %v2579, %v2578
        %v2599 = vpack.c.b16 %v2581, %v2580
        %v2600 = vpack.c.b16 %v2583, %v2582
        %v2601 = vpack.c.b16 %v2585, %v2584
        %v2603 = vsel %vm361, %v2586, 0
        %v2606 = vsel %vm361, %v2587, 0
        %v2609 = vsel %vm361, %v2588, 0
        %v2612 = vsel %vm361, %v2589, 0
        %v2615 = vsel %vm361, %v2590, 0
        %v2618 = vsel %vm361, %v2591, 0
        %v2621 = vsel %vm361, %v2592, 0
        %v2624 = vsel %vm361, %v2593, 0
        %v2627 = vsel %vm361, %v2594, 0
        %v2630 = vsel %vm361, %v2595, 0
        %v2633 = vsel %vm361, %v2596, 0
        %v2636 = vsel %vm361, %v2597, 0
        %v2639 = vsel %vm361, %v2598, 0
        %v2642 = vsel %vm361, %v2599, 0
        %v2645 = vsel %vm361, %v2600, 0
        %v2648 = vsel %vm361, %v2601, 0
        %2650 = vmatpush.bf16.msra.mxu0 0
        %2651 = vmatpush.bf16.msra.mxu0 0
        %2652 = vmatpush.bf16.msra.mxu0 0
        %2653 = vmatpush.bf16.msra.mxu0 0
        %2654 = vmatpush.bf16.msra.mxu0 0
        %2655 = vmatpush.bf16.msra.mxu0 0
        %2656 = vmatpush.bf16.msra.mxu0 %v358
        %2657 = vmatpush.bf16.msra.mxu0 %v357
        %2658 = vmatmul.bf16.gmra.mxu0 %v2603
        %v2659 = vpop.f32.mrf.mxu0
        %v2660 = vadd.f32 %v267, %v2659
        %v2661 = vpop.f32.mrf.mxu0
        %v2662 = vadd.f32 %v267, %v2661
        %2663 = vmatmul.bf16.gmra.mxu0 %v2606
        %v2664 = vpop.f32.mrf.mxu0
        %v2665 = vadd.f32 %v267, %v2664
        %v2666 = vpop.f32.mrf.mxu0
        %v2667 = vadd.f32 %v267, %v2666
        %2668 = vmatmul.bf16.gmra.mxu0 %v2609
        %v2669 = vpop.f32.mrf.mxu0
        %v2670 = vadd.f32 %v267, %v2669
        %v2671 = vpop.f32.mrf.mxu0
        %v2672 = vadd.f32 %v267, %v2671
        %2673 = vmatmul.bf16.gmra.mxu0 %v2612
        %v2674 = vpop.f32.mrf.mxu0
        %v2675 = vadd.f32 %v267, %v2674
        %v2676 = vpop.f32.mrf.mxu0
        %v2677 = vadd.f32 %v267, %v2676
        %2678 = vmatmul.bf16.gmra.mxu0 %v2615
        %v2679 = vpop.f32.mrf.mxu0
        %v2680 = vadd.f32 %v267, %v2679
        %v2681 = vpop.f32.mrf.mxu0
        %v2682 = vadd.f32 %v267, %v2681
        %2683 = vmatmul.bf16.gmra.mxu0 %v2618
        %v2684 = vpop.f32.mrf.mxu0
        %v2685 = vadd.f32 %v267, %v2684
        %v2686 = vpop.f32.mrf.mxu0
        %v2687 = vadd.f32 %v267, %v2686
        %2688 = vmatmul.bf16.gmra.mxu0 %v2621
        %v2689 = vpop.f32.mrf.mxu0
        %v2690 = vadd.f32 %v267, %v2689
        %v2691 = vpop.f32.mrf.mxu0
        %v2692 = vadd.f32 %v267, %v2691
        %2693 = vmatmul.bf16.gmra.mxu0 %v2624
        %v2694 = vpop.f32.mrf.mxu0
        %v2695 = vadd.f32 %v267, %v2694
        %v2696 = vpop.f32.mrf.mxu0
        %v2697 = vadd.f32 %v267, %v2696
        %2698 = vmatmul.bf16.gmra.mxu0 %v2627
        %v2699 = vpop.f32.mrf.mxu0
        %v2700 = vadd.f32 %v267, %v2699
        %v2701 = vpop.f32.mrf.mxu0
        %v2702 = vadd.f32 %v267, %v2701
        %2703 = vmatmul.bf16.gmra.mxu0 %v2630
        %v2704 = vpop.f32.mrf.mxu0
        %v2705 = vadd.f32 %v267, %v2704
        %v2706 = vpop.f32.mrf.mxu0
        %v2707 = vadd.f32 %v267, %v2706
        %2708 = vmatmul.bf16.gmra.mxu0 %v2633
        %v2709 = vpop.f32.mrf.mxu0
        %v2710 = vadd.f32 %v267, %v2709
        %v2711 = vpop.f32.mrf.mxu0
        %v2712 = vadd.f32 %v267, %v2711
        %2713 = vmatmul.bf16.gmra.mxu0 %v2636
        %v2714 = vpop.f32.mrf.mxu0
        %v2715 = vadd.f32 %v267, %v2714
        %v2716 = vpop.f32.mrf.mxu0
        %v2717 = vadd.f32 %v267, %v2716
        %2718 = vmatmul.bf16.gmra.mxu0 %v2639
        %v2719 = vpop.f32.mrf.mxu0
        %v2720 = vadd.f32 %v267, %v2719
        %v2721 = vpop.f32.mrf.mxu0
        %v2722 = vadd.f32 %v267, %v2721
        %2723 = vmatmul.bf16.gmra.mxu0 %v2642
        %v2724 = vpop.f32.mrf.mxu0
        %v2725 = vadd.f32 %v267, %v2724
        %v2726 = vpop.f32.mrf.mxu0
        %v2727 = vadd.f32 %v267, %v2726
        %2728 = vmatmul.bf16.gmra.mxu0 %v2645
        %v2729 = vpop.f32.mrf.mxu0
        %v2730 = vadd.f32 %v267, %v2729
        %v2731 = vpop.f32.mrf.mxu0
        %v2732 = vadd.f32 %v267, %v2731
        %2733 = vmatmul.bf16.gmra.mxu0 %v2648
        %v2734 = vpop.f32.mrf.mxu0
        %v2735 = vadd.f32 %v267, %v2734
        %v2736 = vpop.f32.mrf.mxu0
        %v2737 = vadd.f32 %v267, %v2736
        %2738 = vdwg.mxu0
        %v2739 = vmax.f32 %v2660, 0.0
        %v2740 = vmax.f32 %v2662, 0.0
        %v2741 = vmax.f32 %v2665, 0.0
        %v2742 = vmax.f32 %v2667, 0.0
        %v2743 = vmax.f32 %v2670, 0.0
        %v2744 = vmax.f32 %v2672, 0.0
        %v2745 = vmax.f32 %v2675, 0.0
        %v2746 = vmax.f32 %v2677, 0.0
        %v2747 = vmax.f32 %v2680, 0.0
        %v2748 = vmax.f32 %v2682, 0.0
        %v2749 = vmax.f32 %v2685, 0.0
        %v2750 = vmax.f32 %v2687, 0.0
        %v2751 = vmax.f32 %v2690, 0.0
        %v2752 = vmax.f32 %v2692, 0.0
        %v2753 = vmax.f32 %v2695, 0.0
        %v2754 = vmax.f32 %v2697, 0.0
        %v2755 = vmax.f32 %v2700, 0.0
        %v2756 = vmax.f32 %v2702, 0.0
        %v2757 = vmax.f32 %v2705, 0.0
        %v2758 = vmax.f32 %v2707, 0.0
        %v2759 = vmax.f32 %v2710, 0.0
        %v2760 = vmax.f32 %v2712, 0.0
        %v2761 = vmax.f32 %v2715, 0.0
        %v2762 = vmax.f32 %v2717, 0.0
        %v2763 = vmax.f32 %v2720, 0.0
        %v2764 = vmax.f32 %v2722, 0.0
        %v2765 = vmax.f32 %v2725, 0.0
        %v2766 = vmax.f32 %v2727, 0.0
        %v2767 = vmax.f32 %v2730, 0.0
        %v2768 = vmax.f32 %v2732, 0.0
        %v2769 = vmax.f32 %v2735, 0.0
        %v2770 = vmax.f32 %v2737, 0.0
        %v2771 = vadd.f32 %v2739, %v2740
        %v2772 = vadd.f32 %v2771, %v2741
        %v2773 = vadd.f32 %v2772, %v2742
        %v2774 = vadd.f32 %v2773, %v2743
        %v2775 = vadd.f32 %v2774, %v2744
        %v2776 = vadd.f32 %v2775, %v2745
        %v2777 = vadd.f32 %v2776, %v2746
        %v2778 = vadd.f32 %v2777, %v2747
        %v2779 = vadd.f32 %v2778, %v2748
        %v2780 = vadd.f32 %v2779, %v2749
        %v2781 = vadd.f32 %v2780, %v2750
        %v2782 = vadd.f32 %v2781, %v2751
        %v2783 = vadd.f32 %v2782, %v2752
        %v2784 = vadd.f32 %v2783, %v2753
        %v2785 = vadd.f32 %v2784, %v2754
        %v2786 = vadd.f32 %v2785, %v2755
        %v2787 = vadd.f32 %v2786, %v2756
        %v2788 = vadd.f32 %v2787, %v2757
        %v2789 = vadd.f32 %v2788, %v2758
        %v2790 = vadd.f32 %v2789, %v2759
        %v2791 = vadd.f32 %v2790, %v2760
        %v2792 = vadd.f32 %v2791, %v2761
        %v2793 = vadd.f32 %v2792, %v2762
        %v2794 = vadd.f32 %v2793, %v2763
        %v2795 = vadd.f32 %v2794, %v2764
        %v2796 = vadd.f32 %v2795, %v2765
        %v2797 = vadd.f32 %v2796, %v2766
        %v2798 = vadd.f32 %v2797, %v2767
        %v2799 = vadd.f32 %v2798, %v2768
        %v2800 = vadd.f32 %v2799, %v2769
        %v2801 = vadd.f32 %v2800, %v2770
        %v2802 = vrot.slane %v2801, 4
        %v2803 = vadd.f32 %v2801, %v2802
        %v2804 = vrot.slane %v2803, 2
        %v2805 = vadd.f32 %v2803, %v2804
        %v2806 = vrot.slane %v2805, 1
        %v2807 = vadd.f32 %v2805, %v2806
        %v2808 = vmul.f32 %v2807, 0.00390625
        %vm2809 = vcmask 1040384
        %v2810 = vsel %vm2809, %v568, %v888
        %vm2811 = vcmask 1041408
        %v2812 = vsel %vm2811, %v2810, %v1208
        %vm2813 = vcmask 1042432
        %v2814 = vsel %vm2813, %v2812, %v1528
        %vm2815 = vcmask 1043456
        %v2816 = vsel %vm2815, %v2814, %v1848
        %vm2817 = vcmask 1044480
        %v2818 = vsel %vm2817, %v2816, %v2168
        %vm2819 = vcmask 1045504
        %v2820 = vsel %vm2819, %v2818, %v2488
        %vm2821 = vcmask 1046528
        %v2822 = vsel %vm2821, %v2820, %v2808
        %v2823 = vld [vmem:[%s3] sm:$0xff]
        %v2824 = vld [vmem:[%s3 + $0x8] sm:$0xff]
        %v2825 = vld [vmem:[%s3 + $0x10] sm:$0xff]
        %v2826 = vld [vmem:[%s3 + $0x18] sm:$0xff]
        %v2827 = vld [vmem:[%s3 + $0x20] sm:$0xff]
        %v2828 = vld [vmem:[%s3 + $0x28] sm:$0xff]
        %v2829 = vld [vmem:[%s3 + $0x30] sm:$0xff]
        %v2830 = vld [vmem:[%s3 + $0x38] sm:$0xff]
        %v2831 = vld [vmem:[%s3 + $0x40] sm:$0xff]
        %v2832 = vld [vmem:[%s3 + $0x48] sm:$0xff]
        %v2833 = vld [vmem:[%s3 + $0x50] sm:$0xff]
        %v2834 = vld [vmem:[%s3 + $0x58] sm:$0xff]
        %v2835 = vld [vmem:[%s3 + $0x60] sm:$0xff]
        %v2836 = vld [vmem:[%s3 + $0x68] sm:$0xff]
        %v2837 = vld [vmem:[%s3 + $0x70] sm:$0xff]
        %v2838 = vld [vmem:[%s3 + $0x78] sm:$0xff]
        %v2839 = vld [vmem:[%s4] sm:$0x1]
        %v2841 = vperm.slane %v2839, 0
        %2843 = vmatpush.msra.mxu0 %v2838
        %2844 = vmatpush.msra.mxu0 %v2837
        %2845 = vmatpush.msra.mxu0 %v2836
        %2846 = vmatpush.msra.mxu0 %v2835
        %2847 = vmatpush.msra.mxu0 %v2834
        %2848 = vmatpush.msra.mxu0 %v2833
        %2849 = vmatpush.msra.mxu0 %v2832
        %2850 = vmatpush.msra.mxu0 %v2831
        %2851 = vmatpush.msra.mxu0 %v2830
        %2852 = vmatpush.msra.mxu0 %v2829
        %2853 = vmatpush.msra.mxu0 %v2828
        %2854 = vmatpush.msra.mxu0 %v2827
        %2855 = vmatpush.msra.mxu0 %v2826
        %2856 = vmatpush.msra.mxu0 %v2825
        %2857 = vmatpush.msra.mxu0 %v2824
        %2858 = vmatpush.msra.mxu0 %v2823
        %2859 = vmatmul.f32.gmra.mxu0 %v2822
        %v2860 = vpop.f32.mrf.mxu0
        %v2861 = vadd.f32 %v2841, %v2860
        %2862 = vdwg.mxu0
        %2863 = vst [vmem:[%s220] sm:$0xff] %v2861
        %s2864 = sand.u32 %s137, 1
        %s2865 = scalar_lea.sflag [#allocation3], %s2864
        %s2866 = sand.u32 %s137, 1
        %s2867 = smul.addr %s2866, 8
        %s2868 = scalar_lea.vmem [#allocation2], %s2867
        // Predicated region
        $region41: #{inner_model_forward.1} parent=39 // pred_check
          %p2869 = pneg %p147
        $region42: #{inner_model_forward.1} parent=39 // pred_check_branch
          %2871 = sbr.rel (%p2869) target = $region44
        $region43: #{inner_model_forward.1} parent=39 // pred_region
          %2873 = vsyncadd %s2865, 0
          %s2874 = smul.addr %s19, 8
          %s2875 = scalar_lea.hbm %s5, %s2874
          %s2877 = sshll.u32 %s2868, 4
          %s2878 = int_to_ptr.vmem [resolvable:$true] %s2877
          %s2879 = sshll.u32 %s2875, 4
          %s2880 = int_to_ptr.hbm [resolvable:$true] %s2879
          %2882 = dma.vmem_to_hbm [thread:$0]  %s2878, 128, %s2880, %s2865
        $region44: #{inner_model_forward.1} parent=39 // pred_fallthru
          _
      $region40: #{inner_model_forward.1} parent=5 // pred_fallthru
        _
      %p2883 = scmp.le.s32.totalorder 2, %s14
      // Predicated region
      $region45: #{inner_model_forward.1} parent=5 // pred_check
        %p2884 = pneg %p2883
      $region46: #{inner_model_forward.1} parent=5 // pred_check_branch
        %2886 = sbr.rel (%p2884) target = $region48
      $region47: #{inner_model_forward.1} parent=5 // pred_region
        %s2887 = ssub.s32 %s14, 2
        // Predicated region
        $region49: #{inner_model_forward.1} parent=47 // pred_check
          %p2888 = pneg %p153
        $region50: #{inner_model_forward.1} parent=47 // pred_check_branch
          %2890 = sbr.rel (%p2888) target = $region52
        $region51: #{inner_model_forward.1} parent=47 // pred_region
          %s2891 = sand.u32 %s138, 1
          %s2892 = scalar_lea.sflag [#allocation3], %s2891
          %s2893 = sand.u32 %s138, 1
          %s2894 = smul.addr %s2893, 8
          %s2895 = scalar_lea.vmem [#allocation2], %s2894
          %2897 = dma.done %s2892, 128
        $region52: #{inner_model_forward.1} parent=47 // pred_fallthru
          _
      $region48: #{inner_model_forward.1} parent=5 // pred_fallthru
        _
    $region6: #{inner_model_forward.1} parent=1 // loop_footer
      %s18 = sadd.s32 1, %s14
    $region7: #{inner_model_forward.1} parent=1 // loop_footer_branch
      %13 = sbr.rel target = $region3
    $region8: #{inner_model_forward.1} parent=1 // loop_exit
      _
    %2898 = vsyncpa [#allocation3], 1
    %s2899 = scalar_lea.sflag [#allocation3], 1
    %2900 = vsyncpa %s2899, 1

</llo_original>
